<compile_context>
chip_gen: v6e
topology: v6e:2x2x1
jax: 0.10.0
libtpu: 0.0.40
codegen_flags: <defaults>
</compile_context>

<pallas_src>
import functools

import jax
import jax.numpy as jnp
from jax import lax
from jax.experimental import pallas as pl
from jax.experimental.pallas import tpu as pltpu


_ROW_ALIGN = 16  # bf16 packs 16 sublanes per vreg: keep all row-block offsets aligned


def _round_up(v, m):
    return (v + m - 1) // m * m


# ------------------------------ Pallas kernel -------------------------------

def _qnet_fused_kernel(x_ref, w1_ref, b1_ref, w2_ref, b2_ref, w3_ref, b3_ref,
                       w4_ref, b4_ref, w5_ref, b5_ref, out_ref,
                       *, tn, height, width, cin):
    """Fused QNetwork forward for one batch tile of `tn` samples.

    Layouts (activation row = h*tn + sample, lane = w*cin + c):
      x_ref   : (1, height*tn, width*cin)  bf16 input slab
      w1/w2   : (3*width*cin, width*cin)   kh-concatenated width-folded conv weights
      w3      : (oh2*width*cin, 128)       flattened Linear(F,120) weight (128-padded)
      w4, w5  : (128, 128)                 zero-padded Linear weights
      out_ref : (tn, 128)                  Q values, lane-padded to 128
    MXU operands are bf16; accumulation, bias add and ReLU are f32.
    """
    lanes = width * cin
    oh1 = height - 2           # conv1 output height
    oh2 = oh1 - 2              # conv2 output height

    x = x_ref[0]               # (height*tn, lanes)
    cdt = x.dtype              # compute (MXU operand) dtype

    # conv1: 3x3 VALID conv == ONE (oh1*tn, 3*lanes) @ (3*lanes, lanes) matmul.
    x3 = jnp.concatenate([x[kh * tn:(kh + oh1) * tn, :] for kh in range(3)], axis=-1)
    h1 = jnp.dot(x3, w1_ref[...], preferred_element_type=jnp.float32)
    h1 = jnp.maximum(h1 + b1_ref[...], 0.0).astype(cdt)          # (oh1*tn, lanes)

    # conv2: same K-fused form.  (Edge lanes ww >= w-2 carry partial-sum garbage;
    # they are zeroed out by the w3 packing below, never read as valid data.)
    h13 = jnp.concatenate([h1[kh * tn:(kh + oh2) * tn, :] for kh in range(3)], axis=-1)
    h2 = jnp.dot(h13, w2_ref[...], preferred_element_type=jnp.float32)
    h2 = jnp.maximum(h2 + b2_ref[...], 0.0).astype(cdt)          # (oh2*tn, lanes)

    # Regroup to sample-major (tn, oh2*lanes) and run Linear(F,120) as ONE K=768 dot.
    h2n = jnp.concatenate([h2[oh * tn:(oh + 1) * tn, :] for oh in range(oh2)], axis=-1)
    h3 = jnp.dot(h2n, w3_ref[...], preferred_element_type=jnp.float32)
    h3 = jnp.maximum(h3 + b3_ref[...], 0.0).astype(cdt)          # (tn, 128)

    # Linear(120->84) and Linear(84->A), both padded to 128 lanes (lane-dense store).
    h4 = jnp.dot(h3, w4_ref[...], preferred_element_type=jnp.float32)
    h4 = jnp.maximum(h4 + b4_ref[...], 0.0).astype(cdt)          # (tn, 128)

    out_ref[...] = (jnp.dot(h4, w5_ref[...], preferred_element_type=jnp.float32)
                    + b5_ref[...])


# --------------------------- one-time parameter packing ----------------------

def _fold_conv_weight(w_hwio, width):
    """HWIO (3,3,Cin,Cout) -> (3*width*Cin, width*Cout), kh taps concatenated on K.

    Per kh tap, the kw shift is folded into a block-structured matrix so that
    out[:, wo*Cout+co] = sum_{kw,ci} in[:, (wo+kw)*Cin+ci] * w[kh,kw,ci,co].
    """
    kh_taps, kw_taps, cin, cout = w_hwio.shape
    mats = []
    for kh in range(kh_taps):
        m = jnp.zeros((width * cin, width * cout), jnp.float32)
        for kw in range(kw_taps):
            shift = jnp.eye(width, k=-kw, dtype=jnp.float32)   # w_in = w_out + kw
            m = m + jnp.kron(shift, w_hwio[kh, kw].astype(jnp.float32))
        mats.append(m)
    return jnp.concatenate(mats, axis=0)


def pack_qnetwork_params(params, height, width, *, compute_dtype=jnp.bfloat16):
    """Fold / pad the QNetwork parameters ONCE (hoisted out of the forward pass)."""
    w1, b1, w2, b2, w3, b3, w4, b4, w5, b5 = params
    cin = w1.shape[2]
    lanes = width * cin
    oh2, ow2 = height - 4, width - 4
    d3, d4, a = w3.shape[1], w4.shape[1], w5.shape[1]
    d3p, d4p, ap = (_round_up(d, 128) for d in (d3, d4, a))

    w1c = _fold_conv_weight(w1, width).astype(compute_dtype)        # (3*lanes, lanes)
    w2c = _fold_conv_weight(w2, width).astype(compute_dtype)
    b1t = jnp.tile(jnp.reshape(b1, (1, -1)).astype(jnp.float32), (1, width))  # (1, lanes)
    b2t = jnp.tile(jnp.reshape(b2, (1, -1)).astype(jnp.float32), (1, width))

    # Linear(F,120): PyTorch NCHW flatten order (c, oh, ow) -> kernel order
    # (oh, ww, c); zero the conv-edge lanes ww >= ow2; pad out dim 120 -> 128.
    w3r = jnp.transpose(jnp.reshape(w3.astype(jnp.float32), (cin, oh2, ow2, d3)),
                        (1, 2, 0, 3)).reshape(oh2, ow2 * cin, d3)
    w3r = jnp.pad(w3r, ((0, 0), (0, (width - ow2) * cin), (0, 0)))
    w3c = jnp.pad(w3r.reshape(oh2 * lanes, d3),
                  ((0, 0), (0, d3p - d3))).astype(compute_dtype)     # (oh2*lanes, 128)
    b3p = jnp.pad(jnp.reshape(b3, (1, -1)).astype(jnp.float32), ((0, 0), (0, d3p - d3)))

    w4p = jnp.pad(w4.astype(jnp.float32),
                  ((0, d3p - d3), (0, d4p - d4))).astype(compute_dtype)   # (128, 128)
    b4p = jnp.pad(jnp.reshape(b4, (1, -1)).astype(jnp.float32), ((0, 0), (0, d4p - d4)))
    w5p = jnp.pad(w5.astype(jnp.float32),
                  ((0, d4p - d4), (0, ap - a))).astype(compute_dtype)     # (128, 128)
    b5p = jnp.pad(jnp.reshape(b5, (1, -1)).astype(jnp.float32), ((0, 0), (0, ap - a)))

    return (w1c, b1t, w2c, b2t, w3c, b3p, w4p, b4p, w5p, b5p)


# ------------------------------- forward wrapper -----------------------------

def _choose_tile_rows(n, tile_n):
    """Rows per grid tile: >= 2 tiles whenever the batch can be split (v7x has two
    TensorCores), rows a multiple of 16 so bf16 row-block slices stay vreg-aligned."""
    n_al = _round_up(max(n, 1), _ROW_ALIGN)
    if n_al <= _ROW_ALIGN:
        return _ROW_ALIGN
    half = _round_up(-(-n_al // 2), _ROW_ALIGN)
    return max(_ROW_ALIGN, min(_round_up(int(tile_n), _ROW_ALIGN), half))


@functools.partial(jax.jit, static_argnames=("num_actions", "tile_n"))
def qnetwork_forward(x_nchw, packed, *, num_actions, tile_n=128):
    """Pallas implementation of QNetwork.forward for NCHW float32 input."""
    w1c, b1t, w2c, b2t, w3c, b3p, w4p, b4p, w5p, b5p = packed
    n, c, h, w = x_nchw.shape
    lanes = w * c
    apad = w5p.shape[-1]
    cdt = w1c.dtype

    tn = _choose_tile_rows(n, tile_n)
    npad = _round_up(n, tn)
    nt = npad // tn

    # Input re-layout: cast to bf16 first (half the bytes), pad only when needed,
    # then a single transpose into the slab layout (nt, h*tn, w*c),
    # row = hh*tn + sample, lane = ww*c + cc.
    xb = x_nchw.astype(cdt)
    if npad != n:
        xb = jnp.pad(xb, ((0, npad - n), (0, 0), (0, 0), (0, 0)))
    xr = xb.reshape(nt, tn, c, h, w).transpose(0, 3, 1, 4, 2).reshape(nt, h * tn, lanes)

    kernel = functools.partial(_qnet_fused_kernel, tn=tn, height=h, width=w, cin=c)
    out = pl.pallas_call(
        kernel,
        out_shape=jax.ShapeDtypeStruct((npad, apad), jnp.float32),
        grid=(nt,),
        in_specs=[
            pl.BlockSpec((1, h * tn, lanes), lambda t: (t, 0, 0)),
            pl.BlockSpec(w1c.shape, lambda t: (0, 0)),
            pl.BlockSpec(b1t.shape, lambda t: (0, 0)),
            pl.BlockSpec(w2c.shape, lambda t: (0, 0)),
            pl.BlockSpec(b2t.shape, lambda t: (0, 0)),
            pl.BlockSpec(w3c.shape, lambda t: (0, 0)),
            pl.BlockSpec(b3p.shape, lambda t: (0, 0)),
            pl.BlockSpec(w4p.shape, lambda t: (0, 0)),
            pl.BlockSpec(b4p.shape, lambda t: (0, 0)),
            pl.BlockSpec(w5p.shape, lambda t: (0, 0)),
            pl.BlockSpec(b5p.shape, lambda t: (0, 0)),
        ],
        out_specs=pl.BlockSpec((tn, apad), lambda t: (t, 0)),
        compiler_params=pltpu.CompilerParams(dimension_semantics=("parallel",)),
    )(xr, w1c, b1t, w2c, b2t, w3c, b3p, w4p, b4p, w5p, b5p)

    return out[:n, :num_actions]


# ----------------------------- pure-JAX reference ----------------------------

def reference_forward(x_nchw, params):
    w1, b1, w2, b2, w3, b3, w4, b4, w5, b5 = params
    x = jnp.transpose(x_nchw, (0, 2, 3, 1)).astype(jnp.float32)
    dn = ("NHWC", "HWIO", "NHWC")
    y = lax.conv_general_dilated(x, w1, (1, 1), "VALID", dimension_numbers=dn)
    y = jnp.maximum(y + jnp.reshape(b1, (1, 1, 1, -1)), 0.0)
    y = lax.conv_general_dilated(y, w2, (1, 1), "VALID", dimension_numbers=dn)
    y = jnp.maximum(y + jnp.reshape(b2, (1, 1, 1, -1)), 0.0)
    n = x.shape[0]
    f = jnp.transpose(y, (0, 3, 1, 2)).reshape(n, -1)   # PyTorch NCHW channel-major flatten
    f = jnp.maximum(f @ w3 + b3, 0.0)
    f = jnp.maximum(f @ w4 + b4, 0.0)
    return f @ w5 + b5


# ---------------------------------- main -------------------------------------

if __name__ == "__main__":
    # observation_shape = (H, W, C) as in magent; action_shape = A
    H, W, C = 16, 16, 4
    A = 5
    OH2, OW2 = H - 4, W - 4
    flatten_dim = C * OH2 * OW2

    key = jax.random.PRNGKey(0)
    ks = jax.random.split(key, 11)
    s = 0.1
    # conv weights in HWIO; linear weights as (in, out); biases as (1, out)
    w1 = s * jax.random.normal(ks[0], (3, 3, C, C), jnp.float32)
    b1 = s * jax.random.normal(ks[1], (1, C), jnp.float32)
    w2 = s * jax.random.normal(ks[2], (3, 3, C, C), jnp.float32)
    b2 = s * jax.random.normal(ks[3], (1, C), jnp.float32)
    w3 = s * jax.random.normal(ks[4], (flatten_dim, 120), jnp.float32)
    b3 = s * jax.random.normal(ks[5], (1, 120), jnp.float32)
    w4 = s * jax.random.normal(ks[6], (120, 84), jnp.float32)
    b4 = s * jax.random.normal(ks[7], (1, 84), jnp.float32)
    w5 = s * jax.random.normal(ks[8], (84, A), jnp.float32)
    b5 = s * jax.random.normal(ks[9], (1, A), jnp.float32)
    params = (w1, b1, w2, b2, w3, b3, w4, b4, w5, b5)

    # batched NCHW input, as QNetwork.forward expects from the replay buffer
    x = jax.random.normal(ks[10], (2, C, H, W), jnp.float32)

    packed = pack_qnetwork_params(params, H, W)       # one-time packing (reuse every step)
    out = jax.block_until_ready(qnetwork_forward(x, packed, num_actions=A))
    ref = reference_forward(x, params)

    assert out.shape == (2, A), out.shape
    # bf16 MXU operands with f32 accumulation => slightly looser tolerance than pure f32
    assert jnp.allclose(out, ref, atol=3e-2, rtol=3e-2), \
        f"mismatch vs pure-JAX reference, max abs err {jnp.max(jnp.abs(out - ref))}"
    print("KERNEL_OK")
</pallas_src>

<mosaic_0001>
module attributes {stable_mosaic.version = 11 : i64} {
  func.func @_qnet_fused_kernel(%arg0: i32, %arg1: memref<1x256x64xbf16, #tpu.memory_space<vmem>>, %arg2: memref<192x64xbf16, #tpu.memory_space<vmem>>, %arg3: memref<1x64xf32, #tpu.memory_space<vmem>>, %arg4: memref<192x64xbf16, #tpu.memory_space<vmem>>, %arg5: memref<1x64xf32, #tpu.memory_space<vmem>>, %arg6: memref<768x128xbf16, #tpu.memory_space<vmem>>, %arg7: memref<1x128xf32, #tpu.memory_space<vmem>>, %arg8: memref<128x128xbf16, #tpu.memory_space<vmem>>, %arg9: memref<1x128xf32, #tpu.memory_space<vmem>>, %arg10: memref<128x128xbf16, #tpu.memory_space<vmem>>, %arg11: memref<1x128xf32, #tpu.memory_space<vmem>>, %arg12: memref<16x128xf32, #tpu.memory_space<vmem>>) attributes {dimension_semantics = [#tpu.dimension_semantics<parallel>], iteration_bounds = array<i64: 1>, scalar_prefetch = 0 : i64, scratch_operands = 0 : i64, tpu.core_type = #tpu.core_type<tc>, window_params = [{transform_indices = @transform_0, window_bounds = array<i64: 1, 256, 64>}, {pipeline_mode = #tpu.pipeline_mode<synchronous>, transform_indices = @transform_1, window_bounds = array<i64: 192, 64>}, {pipeline_mode = #tpu.pipeline_mode<synchronous>, transform_indices = @transform_2, window_bounds = array<i64: 1, 64>}, {pipeline_mode = #tpu.pipeline_mode<synchronous>, transform_indices = @transform_3, window_bounds = array<i64: 192, 64>}, {pipeline_mode = #tpu.pipeline_mode<synchronous>, transform_indices = @transform_4, window_bounds = array<i64: 1, 64>}, {pipeline_mode = #tpu.pipeline_mode<synchronous>, transform_indices = @transform_5, window_bounds = array<i64: 768, 128>}, {pipeline_mode = #tpu.pipeline_mode<synchronous>, transform_indices = @transform_6, window_bounds = array<i64: 1, 128>}, {pipeline_mode = #tpu.pipeline_mode<synchronous>, transform_indices = @transform_7, window_bounds = array<i64: 128, 128>}, {pipeline_mode = #tpu.pipeline_mode<synchronous>, transform_indices = @transform_8, window_bounds = array<i64: 1, 128>}, {pipeline_mode = #tpu.pipeline_mode<synchronous>, transform_indices = @transform_9, window_bounds = array<i64: 128, 128>}, {pipeline_mode = #tpu.pipeline_mode<synchronous>, transform_indices = @transform_10, window_bounds = array<i64: 1, 128>}, {transform_indices = @transform_11, window_bounds = array<i64: 16, 128>}]} {
    %c0 = arith.constant 0 : index
    %c0_0 = arith.constant 0 : index
    %c0_1 = arith.constant 0 : index
    %0 = vector.load %arg1[%c0, %c0_0, %c0_1] : memref<1x256x64xbf16, #tpu.memory_space<vmem>>, vector<1x256x64xbf16>
    %1 = vector.shape_cast %0 : vector<1x256x64xbf16> to vector<256x64xbf16>
    %2 = vector.extract_strided_slice %1 {offsets = [0, 0], sizes = [224, 64], strides = [1, 1]} : vector<256x64xbf16> to vector<224x64xbf16>
    %3 = vector.extract_strided_slice %1 {offsets = [16, 0], sizes = [224, 64], strides = [1, 1]} : vector<256x64xbf16> to vector<224x64xbf16>
    %4 = vector.extract_strided_slice %1 {offsets = [32, 0], sizes = [224, 64], strides = [1, 1]} : vector<256x64xbf16> to vector<224x64xbf16>
    %5 = tpu.concatenate %2, %3, %4 in 1 : vector<224x64xbf16>, vector<224x64xbf16>, vector<224x64xbf16> -> vector<224x192xbf16>
    %c0_2 = arith.constant 0 : index
    %c0_3 = arith.constant 0 : index
    %6 = vector.load %arg2[%c0_2, %c0_3] : memref<192x64xbf16, #tpu.memory_space<vmem>>, vector<192x64xbf16>
    %cst = arith.constant dense<0.000000e+00> : vector<224x64xf32>
    %7 = tpu.matmul %5, %6, %cst {dimension_numbers = #tpu.dot_dimension_numbers<[1], [0], [0], [1], [0, 0, 1, 1], [], []>} : vector<224x192xbf16>, vector<192x64xbf16>, vector<224x64xf32> -> vector<224x64xf32>
    %c0_4 = arith.constant 0 : index
    %c0_5 = arith.constant 0 : index
    %8 = vector.load %arg3[%c0_4, %c0_5] : memref<1x64xf32, #tpu.memory_space<vmem>>, vector<1x64xf32>
    %9 = vector.broadcast %8 : vector<1x64xf32> to vector<224x64xf32>
    %10 = arith.addf %7, %9 : vector<224x64xf32>
    %cst_6 = arith.constant 0.000000e+00 : f32
    %11 = vector.broadcast %cst_6 : f32 to vector<224x64xf32>
    %12 = arith.maximumf %10, %11 : vector<224x64xf32>
    %13 = arith.truncf %12 : vector<224x64xf32> to vector<224x64xbf16>
    %14 = vector.extract_strided_slice %13 {offsets = [0, 0], sizes = [192, 64], strides = [1, 1]} : vector<224x64xbf16> to vector<192x64xbf16>
    %15 = vector.extract_strided_slice %13 {offsets = [16, 0], sizes = [192, 64], strides = [1, 1]} : vector<224x64xbf16> to vector<192x64xbf16>
    %16 = vector.extract_strided_slice %13 {offsets = [32, 0], sizes = [192, 64], strides = [1, 1]} : vector<224x64xbf16> to vector<192x64xbf16>
    %17 = tpu.concatenate %14, %15, %16 in 1 : vector<192x64xbf16>, vector<192x64xbf16>, vector<192x64xbf16> -> vector<192x192xbf16>
    %c0_7 = arith.constant 0 : index
    %c0_8 = arith.constant 0 : index
    %18 = vector.load %arg4[%c0_7, %c0_8] : memref<192x64xbf16, #tpu.memory_space<vmem>>, vector<192x64xbf16>
    %cst_9 = arith.constant dense<0.000000e+00> : vector<192x64xf32>
    %19 = tpu.matmul %17, %18, %cst_9 {dimension_numbers = #tpu.dot_dimension_numbers<[1], [0], [0], [1], [0, 0, 1, 1], [], []>} : vector<192x192xbf16>, vector<192x64xbf16>, vector<192x64xf32> -> vector<192x64xf32>
    %c0_10 = arith.constant 0 : index
    %c0_11 = arith.constant 0 : index
    %20 = vector.load %arg5[%c0_10, %c0_11] : memref<1x64xf32, #tpu.memory_space<vmem>>, vector<1x64xf32>
    %21 = vector.broadcast %20 : vector<1x64xf32> to vector<192x64xf32>
    %22 = arith.addf %19, %21 : vector<192x64xf32>
    %cst_12 = arith.constant 0.000000e+00 : f32
    %23 = vector.broadcast %cst_12 : f32 to vector<192x64xf32>
    %24 = arith.maximumf %22, %23 : vector<192x64xf32>
    %25 = arith.truncf %24 : vector<192x64xf32> to vector<192x64xbf16>
    %26 = vector.extract_strided_slice %25 {offsets = [0, 0], sizes = [16, 64], strides = [1, 1]} : vector<192x64xbf16> to vector<16x64xbf16>
    %27 = vector.extract_strided_slice %25 {offsets = [16, 0], sizes = [16, 64], strides = [1, 1]} : vector<192x64xbf16> to vector<16x64xbf16>
    %28 = vector.extract_strided_slice %25 {offsets = [32, 0], sizes = [16, 64], strides = [1, 1]} : vector<192x64xbf16> to vector<16x64xbf16>
    %29 = vector.extract_strided_slice %25 {offsets = [48, 0], sizes = [16, 64], strides = [1, 1]} : vector<192x64xbf16> to vector<16x64xbf16>
    %30 = vector.extract_strided_slice %25 {offsets = [64, 0], sizes = [16, 64], strides = [1, 1]} : vector<192x64xbf16> to vector<16x64xbf16>
    %31 = vector.extract_strided_slice %25 {offsets = [80, 0], sizes = [16, 64], strides = [1, 1]} : vector<192x64xbf16> to vector<16x64xbf16>
    %32 = vector.extract_strided_slice %25 {offsets = [96, 0], sizes = [16, 64], strides = [1, 1]} : vector<192x64xbf16> to vector<16x64xbf16>
    %33 = vector.extract_strided_slice %25 {offsets = [112, 0], sizes = [16, 64], strides = [1, 1]} : vector<192x64xbf16> to vector<16x64xbf16>
    %34 = vector.extract_strided_slice %25 {offsets = [128, 0], sizes = [16, 64], strides = [1, 1]} : vector<192x64xbf16> to vector<16x64xbf16>
    %35 = vector.extract_strided_slice %25 {offsets = [144, 0], sizes = [16, 64], strides = [1, 1]} : vector<192x64xbf16> to vector<16x64xbf16>
    %36 = vector.extract_strided_slice %25 {offsets = [160, 0], sizes = [16, 64], strides = [1, 1]} : vector<192x64xbf16> to vector<16x64xbf16>
    %37 = vector.extract_strided_slice %25 {offsets = [176, 0], sizes = [16, 64], strides = [1, 1]} : vector<192x64xbf16> to vector<16x64xbf16>
    %38 = tpu.concatenate %26, %27, %28, %29, %30, %31, %32, %33, %34, %35, %36, %37 in 1 : vector<16x64xbf16>, vector<16x64xbf16>, vector<16x64xbf16>, vector<16x64xbf16>, vector<16x64xbf16>, vector<16x64xbf16>, vector<16x64xbf16>, vector<16x64xbf16>, vector<16x64xbf16>, vector<16x64xbf16>, vector<16x64xbf16>, vector<16x64xbf16> -> vector<16x768xbf16>
    %c0_13 = arith.constant 0 : index
    %c0_14 = arith.constant 0 : index
    %39 = vector.load %arg6[%c0_13, %c0_14] : memref<768x128xbf16, #tpu.memory_space<vmem>>, vector<768x128xbf16>
    %cst_15 = arith.constant dense<0.000000e+00> : vector<16x128xf32>
    %40 = tpu.matmul %38, %39, %cst_15 {dimension_numbers = #tpu.dot_dimension_numbers<[1], [0], [0], [1], [0, 0, 1, 1], [], []>} : vector<16x768xbf16>, vector<768x128xbf16>, vector<16x128xf32> -> vector<16x128xf32>
    %c0_16 = arith.constant 0 : index
    %c0_17 = arith.constant 0 : index
    %41 = vector.load %arg7[%c0_16, %c0_17] : memref<1x128xf32, #tpu.memory_space<vmem>>, vector<1x128xf32>
    %42 = vector.broadcast %41 : vector<1x128xf32> to vector<16x128xf32>
    %43 = arith.addf %40, %42 : vector<16x128xf32>
    %cst_18 = arith.constant 0.000000e+00 : f32
    %44 = vector.broadcast %cst_18 : f32 to vector<16x128xf32>
    %45 = arith.maximumf %43, %44 : vector<16x128xf32>
    %46 = arith.truncf %45 : vector<16x128xf32> to vector<16x128xbf16>
    %c0_19 = arith.constant 0 : index
    %c0_20 = arith.constant 0 : index
    %47 = vector.load %arg8[%c0_19, %c0_20] : memref<128x128xbf16, #tpu.memory_space<vmem>>, vector<128x128xbf16>
    %cst_21 = arith.constant dense<0.000000e+00> : vector<16x128xf32>
    %48 = tpu.matmul %46, %47, %cst_21 {dimension_numbers = #tpu.dot_dimension_numbers<[1], [0], [0], [1], [0, 0, 1, 1], [], []>} : vector<16x128xbf16>, vector<128x128xbf16>, vector<16x128xf32> -> vector<16x128xf32>
    %c0_22 = arith.constant 0 : index
    %c0_23 = arith.constant 0 : index
    %49 = vector.load %arg9[%c0_22, %c0_23] : memref<1x128xf32, #tpu.memory_space<vmem>>, vector<1x128xf32>
    %50 = vector.broadcast %49 : vector<1x128xf32> to vector<16x128xf32>
    %51 = arith.addf %48, %50 : vector<16x128xf32>
    %cst_24 = arith.constant 0.000000e+00 : f32
    %52 = vector.broadcast %cst_24 : f32 to vector<16x128xf32>
    %53 = arith.maximumf %51, %52 : vector<16x128xf32>
    %54 = arith.truncf %53 : vector<16x128xf32> to vector<16x128xbf16>
    %c0_25 = arith.constant 0 : index
    %c0_26 = arith.constant 0 : index
    %55 = vector.load %arg10[%c0_25, %c0_26] : memref<128x128xbf16, #tpu.memory_space<vmem>>, vector<128x128xbf16>
    %cst_27 = arith.constant dense<0.000000e+00> : vector<16x128xf32>
    %56 = tpu.matmul %54, %55, %cst_27 {dimension_numbers = #tpu.dot_dimension_numbers<[1], [0], [0], [1], [0, 0, 1, 1], [], []>} : vector<16x128xbf16>, vector<128x128xbf16>, vector<16x128xf32> -> vector<16x128xf32>
    %c0_28 = arith.constant 0 : index
    %c0_29 = arith.constant 0 : index
    %57 = vector.load %arg11[%c0_28, %c0_29] : memref<1x128xf32, #tpu.memory_space<vmem>>, vector<1x128xf32>
    %58 = vector.broadcast %57 : vector<1x128xf32> to vector<16x128xf32>
    %59 = arith.addf %56, %58 : vector<16x128xf32>
    %c0_30 = arith.constant 0 : index
    %c0_31 = arith.constant 0 : index
    %60 = vector.load %arg12[%c0_30, %c0_31] : memref<16x128xf32, #tpu.memory_space<vmem>>, vector<16x128xf32>
    tpu.vector_store %arg12[%c0_30, %c0_31], %59 {strides = array<i32>} : memref<16x128xf32, #tpu.memory_space<vmem>>, vector<16x128xf32>,
    return
  }
  func.func @transform_0(%arg0: i32) -> (i32, i32, i32) {
    %c0_i32 = arith.constant 0 : i32
    %c0_i32_0 = arith.constant 0 : i32
    %c0_i32_1 = arith.constant 0 : i32
    return %arg0, %c0_i32, %c0_i32_0 : i32, i32, i32
  }
  func.func @transform_1(%arg0: i32) -> (i32, i32) {
    %c0_i32 = arith.constant 0 : i32
    %c0_i32_0 = arith.constant 0 : i32
    %c0_i32_1 = arith.constant 0 : i32
    return %c0_i32, %c0_i32_0 : i32, i32
  }
  func.func @transform_2(%arg0: i32) -> (i32, i32) {
    %c0_i32 = arith.constant 0 : i32
    %c0_i32_0 = arith.constant 0 : i32
    %c0_i32_1 = arith.constant 0 : i32
    return %c0_i32, %c0_i32_0 : i32, i32
  }
  func.func @transform_3(%arg0: i32) -> (i32, i32) {
    %c0_i32 = arith.constant 0 : i32
    %c0_i32_0 = arith.constant 0 : i32
    %c0_i32_1 = arith.constant 0 : i32
    return %c0_i32, %c0_i32_0 : i32, i32
  }
  func.func @transform_4(%arg0: i32) -> (i32, i32) {
    %c0_i32 = arith.constant 0 : i32
    %c0_i32_0 = arith.constant 0 : i32
    %c0_i32_1 = arith.constant 0 : i32
    return %c0_i32, %c0_i32_0 : i32, i32
  }
  func.func @transform_5(%arg0: i32) -> (i32, i32) {
    %c0_i32 = arith.constant 0 : i32
    %c0_i32_0 = arith.constant 0 : i32
    %c0_i32_1 = arith.constant 0 : i32
    return %c0_i32, %c0_i32_0 : i32, i32
  }
  func.func @transform_6(%arg0: i32) -> (i32, i32) {
    %c0_i32 = arith.constant 0 : i32
    %c0_i32_0 = arith.constant 0 : i32
    %c0_i32_1 = arith.constant 0 : i32
    return %c0_i32, %c0_i32_0 : i32, i32
  }
  func.func @transform_7(%arg0: i32) -> (i32, i32) {
    %c0_i32 = arith.constant 0 : i32
    %c0_i32_0 = arith.constant 0 : i32
    %c0_i32_1 = arith.constant 0 : i32
    return %c0_i32, %c0_i32_0 : i32, i32
  }
  func.func @transform_8(%arg0: i32) -> (i32, i32) {
    %c0_i32 = arith.constant 0 : i32
    %c0_i32_0 = arith.constant 0 : i32
    %c0_i32_1 = arith.constant 0 : i32
    return %c0_i32, %c0_i32_0 : i32, i32
  }
  func.func @transform_9(%arg0: i32) -> (i32, i32) {
    %c0_i32 = arith.constant 0 : i32
    %c0_i32_0 = arith.constant 0 : i32
    %c0_i32_1 = arith.constant 0 : i32
    return %c0_i32, %c0_i32_0 : i32, i32
  }
  func.func @transform_10(%arg0: i32) -> (i32, i32) {
    %c0_i32 = arith.constant 0 : i32
    %c0_i32_0 = arith.constant 0 : i32
    %c0_i32_1 = arith.constant 0 : i32
    return %c0_i32, %c0_i32_0 : i32, i32
  }
  func.func @transform_11(%arg0: i32) -> (i32, i32) {
    %c0_i32 = arith.constant 0 : i32
    %c0_i32_0 = arith.constant 0 : i32
    return %arg0, %c0_i32 : i32, i32
  }
}

</mosaic_0001>

<llo_original>
// kernel: qnetwork_forward.1
$region0: #{qnetwork_forward.1}
  #allocation0 [shape = 'u32[]', space=smem, size = 0x4, offset = 0x4, fixed_abs, tag = 'smem constant byte address 0x4 - core index']
  #allocation1 [shape = 'u32[144,128]{1,0:T(1,128)}', space=vmem, size = 0x12000, scoped, tag = 'internal scratch']
  %s0 = inlined_call_operand.vmem [shape: bf16[1,256,64], index: 0, kind: input, shape index: {}]
  %s1 = inlined_call_operand.vmem [shape: bf16[192,64], index: 1, kind: input, shape index: {}]
  %s2 = inlined_call_operand.vmem [shape: f32[1,64], index: 2, kind: input, shape index: {}]
  %s3 = inlined_call_operand.vmem [shape: bf16[192,64], index: 3, kind: input, shape index: {}]
  %s4 = inlined_call_operand.vmem [shape: f32[1,64], index: 4, kind: input, shape index: {}]
  %s5 = inlined_call_operand.vmem [shape: bf16[768,128], index: 5, kind: input, shape index: {}]
  %s6 = inlined_call_operand.vmem [shape: f32[1,128], index: 6, kind: input, shape index: {}]
  %s7 = inlined_call_operand.vmem [shape: bf16[128,128], index: 7, kind: input, shape index: {}]
  %s8 = inlined_call_operand.vmem [shape: f32[1,128], index: 8, kind: input, shape index: {}]
  %s9 = inlined_call_operand.vmem [shape: bf16[128,128], index: 9, kind: input, shape index: {}]
  %s10 = inlined_call_operand.vmem [shape: f32[1,128], index: 10, kind: input, shape index: {}]
  %s11 = inlined_call_operand.vmem [shape: f32[16,128], index: 11, kind: output, shape index: {}]
  %s12 = sld [smem:[#allocation0]]
  $region54: #{qnetwork_forward.1} parent=0
    _
  %s14 = ssub.s32 1, %s12
  %s15 = scalar_select 0, %s14, %s12
  // Predicated region
  $region2: #{qnetwork_forward.1} parent=0 // pred_check
    _
  $region3: #{qnetwork_forward.1} parent=0 // pred_check_branch
    %17 = sbr.rel (0) target = $region5
  $region4: #{qnetwork_forward.1} parent=0 // pred_region
    _
  $region5: #{qnetwork_forward.1} parent=0 // pred_fallthru
    _
  // Predicated region
  $region6: #{qnetwork_forward.1} parent=0 // pred_check
    _
  $region7: #{qnetwork_forward.1} parent=0 // pred_check_branch
    %19 = sbr.rel (0) target = $region9
  $region8: #{qnetwork_forward.1} parent=0 // pred_region
    _
  $region9: #{qnetwork_forward.1} parent=0 // pred_fallthru
    _
  // Predicated region
  $region10: #{qnetwork_forward.1} parent=0 // pred_check
    _
  $region11: #{qnetwork_forward.1} parent=0 // pred_check_branch
    %21 = sbr.rel (0) target = $region13
  $region12: #{qnetwork_forward.1} parent=0 // pred_region
    _
  $region13: #{qnetwork_forward.1} parent=0 // pred_fallthru
    _
  // Predicated region
  $region14: #{qnetwork_forward.1} parent=0 // pred_check
    _
  $region15: #{qnetwork_forward.1} parent=0 // pred_check_branch
    %23 = sbr.rel (0) target = $region17
  $region16: #{qnetwork_forward.1} parent=0 // pred_region
    _
  $region17: #{qnetwork_forward.1} parent=0 // pred_fallthru
    _
  // Predicated region
  $region18: #{qnetwork_forward.1} parent=0 // pred_check
    _
  $region19: #{qnetwork_forward.1} parent=0 // pred_check_branch
    %25 = sbr.rel (0) target = $region21
  $region20: #{qnetwork_forward.1} parent=0 // pred_region
    _
  $region21: #{qnetwork_forward.1} parent=0 // pred_fallthru
    _
  // Predicated region
  $region22: #{qnetwork_forward.1} parent=0 // pred_check
    _
  $region23: #{qnetwork_forward.1} parent=0 // pred_check_branch
    %27 = sbr.rel (0) target = $region25
  $region24: #{qnetwork_forward.1} parent=0 // pred_region
    _
  $region25: #{qnetwork_forward.1} parent=0 // pred_fallthru
    _
  // Predicated region
  $region26: #{qnetwork_forward.1} parent=0 // pred_check
    _
  $region27: #{qnetwork_forward.1} parent=0 // pred_check_branch
    %29 = sbr.rel (0) target = $region29
  $region28: #{qnetwork_forward.1} parent=0 // pred_region
    _
  $region29: #{qnetwork_forward.1} parent=0 // pred_fallthru
    _
  // Predicated region
  $region30: #{qnetwork_forward.1} parent=0 // pred_check
    _
  $region31: #{qnetwork_forward.1} parent=0 // pred_check_branch
    %31 = sbr.rel (0) target = $region33
  $region32: #{qnetwork_forward.1} parent=0 // pred_region
    _
  $region33: #{qnetwork_forward.1} parent=0 // pred_fallthru
    _
  // Predicated region
  $region34: #{qnetwork_forward.1} parent=0 // pred_check
    _
  $region35: #{qnetwork_forward.1} parent=0 // pred_check_branch
    %33 = sbr.rel (0) target = $region37
  $region36: #{qnetwork_forward.1} parent=0 // pred_region
    _
  $region37: #{qnetwork_forward.1} parent=0 // pred_fallthru
    _
  // Predicated region
  $region38: #{qnetwork_forward.1} parent=0 // pred_check
    _
  $region39: #{qnetwork_forward.1} parent=0 // pred_check_branch
    %35 = sbr.rel (0) target = $region41
  $region40: #{qnetwork_forward.1} parent=0 // pred_region
    _
  $region41: #{qnetwork_forward.1} parent=0 // pred_fallthru
    _
  // Predicated region
  $region42: #{qnetwork_forward.1} parent=0 // pred_check
    _
  $region43: #{qnetwork_forward.1} parent=0 // pred_check_branch
    %37 = sbr.rel (0) target = $region45
  $region44: #{qnetwork_forward.1} parent=0 // pred_region
    _
  $region45: #{qnetwork_forward.1} parent=0 // pred_fallthru
    _
  %v39 = vld [vmem:[%s0] sm:$0xf]
  %v40 = vld [vmem:[%s0 + $0x4] sm:$0xf]
  %v41 = vld [vmem:[%s0 + $0x8] sm:$0xf]
  %v42 = vld [vmem:[%s0 + $0xc] sm:$0xf]
  %v43 = vld [vmem:[%s0 + $0x10] sm:$0xf]
  %v44 = vld [vmem:[%s0 + $0x14] sm:$0xf]
  %v45 = vld [vmem:[%s0 + $0x18] sm:$0xf]
  %v46 = vld [vmem:[%s0 + $0x1c] sm:$0xf]
  %v47 = vld [vmem:[%s0 + $0x20] sm:$0xf]
  %v48 = vld [vmem:[%s0 + $0x24] sm:$0xf]
  %v49 = vld [vmem:[%s0 + $0x28] sm:$0xf]
  %v50 = vld [vmem:[%s0 + $0x2c] sm:$0xf]
  %v51 = vld [vmem:[%s0 + $0x30] sm:$0xf]
  %v52 = vld [vmem:[%s0 + $0x34] sm:$0xf]
  %v53 = vld [vmem:[%s0 + $0x38] sm:$0xf]
  %v54 = vld [vmem:[%s0 + $0x3c] sm:$0xf]
  %v55 = vld [vmem:[%s0 + $0x40] sm:$0xf]
  %v56 = vld [vmem:[%s0 + $0x44] sm:$0xf]
  %v57 = vld [vmem:[%s0 + $0x48] sm:$0xf]
  %v58 = vld [vmem:[%s0 + $0x4c] sm:$0xf]
  %v59 = vld [vmem:[%s0 + $0x50] sm:$0xf]
  %v60 = vld [vmem:[%s0 + $0x54] sm:$0xf]
  %v61 = vld [vmem:[%s0 + $0x58] sm:$0xf]
  %v62 = vld [vmem:[%s0 + $0x5c] sm:$0xf]
  %v63 = vld [vmem:[%s0 + $0x60] sm:$0xf]
  %v64 = vld [vmem:[%s0 + $0x64] sm:$0xf]
  %v65 = vld [vmem:[%s0 + $0x68] sm:$0xf]
  %v66 = vld [vmem:[%s0 + $0x6c] sm:$0xf]
  %v67 = vld [vmem:[%s0 + $0x70] sm:$0xf]
  %v68 = vld [vmem:[%s0 + $0x74] sm:$0xf]
  %v69 = vld [vmem:[%s0 + $0x78] sm:$0xf]
  %v70 = vld [vmem:[%s0 + $0x7c] sm:$0xf]
  %v99 = vunpack.c.l.b16 %v39
  %v100 = vunpack.c.l.b16 %v40
  %v101 = vunpack.c.l.b16 %v41
  %v102 = vunpack.c.l.b16 %v42
  %v103 = vunpack.c.l.b16 %v43
  %v104 = vunpack.c.l.b16 %v44
  %v105 = vunpack.c.l.b16 %v45
  %v106 = vunpack.c.l.b16 %v46
  %v107 = vunpack.c.l.b16 %v47
  %v108 = vunpack.c.l.b16 %v48
  %v109 = vunpack.c.l.b16 %v49
  %v110 = vunpack.c.l.b16 %v50
  %v111 = vunpack.c.l.b16 %v51
  %v112 = vunpack.c.l.b16 %v52
  %v113 = vunpack.c.l.b16 %v53
  %v114 = vunpack.c.l.b16 %v54
  %v115 = vunpack.c.l.b16 %v55
  %v116 = vunpack.c.l.b16 %v56
  %v117 = vunpack.c.l.b16 %v57
  %v118 = vunpack.c.l.b16 %v58
  %v119 = vunpack.c.l.b16 %v59
  %v120 = vunpack.c.l.b16 %v60
  %v121 = vunpack.c.l.b16 %v61
  %v122 = vunpack.c.l.b16 %v62
  %v123 = vunpack.c.l.b16 %v63
  %v124 = vunpack.c.l.b16 %v64
  %v125 = vunpack.c.l.b16 %v65
  %v126 = vunpack.c.l.b16 %v66
  %v127 = vpack.c.b16 %v100, %v99
  %v128 = vpack.c.b16 %v102, %v101
  %v129 = vpack.c.b16 %v104, %v103
  %v130 = vpack.c.b16 %v106, %v105
  %v131 = vpack.c.b16 %v108, %v107
  %v132 = vpack.c.b16 %v110, %v109
  %v133 = vpack.c.b16 %v112, %v111
  %v134 = vpack.c.b16 %v114, %v113
  %v135 = vpack.c.b16 %v116, %v115
  %v136 = vpack.c.b16 %v118, %v117
  %v137 = vpack.c.b16 %v120, %v119
  %v138 = vpack.c.b16 %v122, %v121
  %v139 = vpack.c.b16 %v124, %v123
  %v140 = vpack.c.b16 %v126, %v125
  %v143 = vunpack.c.l.b16 %v67
  %v144 = vunpack.c.l.b16 %v68
  %v145 = vpack.c.b16 %v144, %v143
  %146 = vrot.lane.b32.xlu0 %v128, 64
  %v147 = vpop.permute.xlu0 %146
  %148 = vrot.lane.b32.xlu0 %v129, 64
  %v149 = vpop.permute.xlu0 %148
  %150 = vrot.lane.b32.xlu0 %v130, 64
  %v151 = vpop.permute.xlu0 %150
  %152 = vrot.lane.b32.xlu0 %v131, 64
  %v153 = vpop.permute.xlu0 %152
  %154 = vrot.lane.b32.xlu0 %v132, 64
  %v155 = vpop.permute.xlu0 %154
  %156 = vrot.lane.b32.xlu0 %v133, 64
  %v157 = vpop.permute.xlu0 %156
  %158 = vrot.lane.b32.xlu0 %v134, 64
  %v159 = vpop.permute.xlu0 %158
  %160 = vrot.lane.b32.xlu0 %v135, 64
  %v161 = vpop.permute.xlu0 %160
  %162 = vrot.lane.b32.xlu0 %v136, 64
  %v163 = vpop.permute.xlu0 %162
  %164 = vrot.lane.b32.xlu0 %v137, 64
  %v165 = vpop.permute.xlu0 %164
  %166 = vrot.lane.b32.xlu0 %v138, 64
  %v167 = vpop.permute.xlu0 %166
  %168 = vrot.lane.b32.xlu0 %v139, 64
  %v169 = vpop.permute.xlu0 %168
  %170 = vrot.lane.b32.xlu0 %v140, 64
  %v171 = vpop.permute.xlu0 %170
  %172 = vrot.lane.b32.xlu0 %v145, 64
  %v173 = vpop.permute.xlu0 %172
  %v176 = vunpack.c.l.b16 %v69
  %v177 = vunpack.c.l.b16 %v70
  %v178 = vpack.c.b16 %v177, %v176
  %vm179 = vcmask 523264
  %v182 = vsel %vm179, %v127, %v147
  %v186 = vsel %vm179, %v128, %v149
  %v190 = vsel %vm179, %v129, %v151
  %v194 = vsel %vm179, %v130, %v153
  %v198 = vsel %vm179, %v131, %v155
  %v202 = vsel %vm179, %v132, %v157
  %v206 = vsel %vm179, %v133, %v159
  %v210 = vsel %vm179, %v134, %v161
  %v214 = vsel %vm179, %v135, %v163
  %v218 = vsel %vm179, %v136, %v165
  %v222 = vsel %vm179, %v137, %v167
  %v226 = vsel %vm179, %v138, %v169
  %v230 = vsel %vm179, %v139, %v171
  %v234 = vsel %vm179, %v140, %v173
  %v236 = vld [vmem:[%s1] sm:$0xf]
  %v237 = vld [vmem:[%s1 + $0x4] sm:$0xf]
  %v238 = vld [vmem:[%s1 + $0x8] sm:$0xf]
  %v239 = vld [vmem:[%s1 + $0xc] sm:$0xf]
  %v240 = vld [vmem:[%s1 + $0x10] sm:$0xf]
  %v241 = vld [vmem:[%s1 + $0x14] sm:$0xf]
  %v242 = vld [vmem:[%s1 + $0x18] sm:$0xf]
  %v243 = vld [vmem:[%s1 + $0x1c] sm:$0xf]
  %v244 = vld [vmem:[%s1 + $0x20] sm:$0xf]
  %v245 = vld [vmem:[%s1 + $0x24] sm:$0xf]
  %v246 = vld [vmem:[%s1 + $0x28] sm:$0xf]
  %v247 = vld [vmem:[%s1 + $0x2c] sm:$0xf]
  %v248 = vld [vmem:[%s1 + $0x30] sm:$0xf]
  %v249 = vld [vmem:[%s1 + $0x34] sm:$0xf]
  %v250 = vld [vmem:[%s1 + $0x38] sm:$0xf]
  %v251 = vld [vmem:[%s1 + $0x3c] sm:$0xf]
  %v252 = vld [vmem:[%s1 + $0x40] sm:$0xf]
  %v253 = vld [vmem:[%s1 + $0x44] sm:$0xf]
  %v254 = vld [vmem:[%s1 + $0x48] sm:$0xf]
  %v255 = vld [vmem:[%s1 + $0x4c] sm:$0xf]
  %v256 = vld [vmem:[%s1 + $0x50] sm:$0xf]
  %v257 = vld [vmem:[%s1 + $0x54] sm:$0xf]
  %v258 = vld [vmem:[%s1 + $0x58] sm:$0xf]
  %v259 = vld [vmem:[%s1 + $0x5c] sm:$0xf]
  %v260 = vld [vmem:[%s2] sm:$0x1]
  %v262 = vlaneseq
  %v263 = vshrl.u32 %v262, 7
  %v264 = vsub.s32 0, %v263
  %v265 = vrot.slane %v260, %v264
  %v291 = vunpack.c.l.b16 %v236
  %v292 = vunpack.c.l.b16 %v237
  %v293 = vunpack.c.l.b16 %v238
  %v294 = vunpack.c.l.b16 %v239
  %v295 = vunpack.c.l.b16 %v240
  %v296 = vunpack.c.l.b16 %v241
  %v297 = vunpack.c.l.b16 %v242
  %v298 = vunpack.c.l.b16 %v243
  %v299 = vunpack.c.l.b16 %v244
  %v300 = vunpack.c.l.b16 %v245
  %v301 = vunpack.c.l.b16 %v246
  %v302 = vunpack.c.l.b16 %v247
  %v303 = vunpack.c.l.b16 %v248
  %v304 = vunpack.c.l.b16 %v249
  %v305 = vunpack.c.l.b16 %v250
  %v306 = vunpack.c.l.b16 %v251
  %v307 = vunpack.c.l.b16 %v252
  %v308 = vunpack.c.l.b16 %v253
  %v309 = vunpack.c.l.b16 %v254
  %v310 = vunpack.c.l.b16 %v255
  %v311 = vunpack.c.l.b16 %v256
  %v312 = vunpack.c.l.b16 %v257
  %v313 = vunpack.c.l.b16 %v258
  %v314 = vunpack.c.l.b16 %v259
  %v315 = vpack.c.b16 %v292, %v291
  %v316 = vpack.c.b16 %v294, %v293
  %v317 = vpack.c.b16 %v296, %v295
  %v318 = vpack.c.b16 %v298, %v297
  %v319 = vpack.c.b16 %v300, %v299
  %v320 = vpack.c.b16 %v302, %v301
  %v321 = vpack.c.b16 %v304, %v303
  %v322 = vpack.c.b16 %v306, %v305
  %v323 = vpack.c.b16 %v308, %v307
  %v324 = vpack.c.b16 %v310, %v309
  %v325 = vpack.c.b16 %v312, %v311
  %v326 = vpack.c.b16 %v314, %v313
  %v339 = vsel %vm179, %v129, 0
  %v341 = vsel %vm179, %v130, 0
  %v343 = vsel %vm179, %v131, 0
  %v345 = vsel %vm179, %v132, 0
  %v347 = vsel %vm179, %v133, 0
  %v349 = vsel %vm179, %v134, 0
  %v351 = vsel %vm179, %v135, 0
  %v353 = vsel %vm179, %v136, 0
  %v355 = vsel %vm179, %v137, 0
  %v357 = vsel %vm179, %v138, 0
  %v359 = vsel %vm179, %v139, 0
  %v361 = vsel %vm179, %v140, 0
  %v364 = vsel %vm179, %v145, 0
  %v367 = vsel %vm179, %v178, 0
  %369 = vmatprep.subr.bf16.mxu0 0
  %370 = vmatpush1.bf16.msra.mxu0 %v322
  %371 = vmatprep.subr.bf16.mxu0 0
  %372 = vmatpush1.bf16.msra.mxu0 %v321
  %373 = vmatprep.subr.bf16.mxu0 0
  %374 = vmatpush1.bf16.msra.mxu0 %v320
  %375 = vmatprep.subr.bf16.mxu0 0
  %376 = vmatpush1.bf16.msra.mxu0 %v319
  %377 = vmatprep.subr.bf16.mxu0 0
  %378 = vmatpush1.bf16.msra.mxu0 %v318
  %379 = vmatprep.subr.bf16.mxu0 0
  %380 = vmatpush1.bf16.msra.mxu0 %v317
  %381 = vmatprep.subr.bf16.mxu0 0
  %382 = vmatpush1.bf16.msra.mxu0 %v316
  %383 = vmatprep.subr.bf16.mxu0 0
  %384 = vmatpush1.bf16.msra.mxu0 %v315
  %385 = vmatprep.subr.bf16.mxu0 0
  %386 = vmatpush2.bf16.msra.mxu0 0
  %387 = vmatprep.subr.bf16.mxu0 0
  %388 = vmatpush2.bf16.msra.mxu0 0
  %389 = vmatprep.subr.bf16.mxu0 0
  %390 = vmatpush2.bf16.msra.mxu0 0
  %391 = vmatprep.subr.bf16.mxu0 0
  %392 = vmatpush2.bf16.msra.mxu0 0
  %393 = vmatprep.subr.bf16.mxu0 0
  %394 = vmatpush2.bf16.msra.mxu0 %v326
  %395 = vmatprep.subr.bf16.mxu0 0
  %396 = vmatpush2.bf16.msra.mxu0 %v325
  %397 = vmatprep.subr.bf16.mxu0 0
  %398 = vmatpush2.bf16.msra.mxu0 %v324
  %399 = vmatprep.subr.bf16.mxu0 0
  %400 = vmatpush2.bf16.msra.mxu0 %v323
  %401 = vmatprep.mubr.bf16.mxu0 %v339
  %402 = vmatmul.mubr.bf16.gmra.mxu0 %v182
  %v403 = vpop.f32.mrf.mxu0
  %v404 = vadd.f32 %v265, %v403
  %v405 = vpop.f32.mrf.mxu0
  %v406 = vpop.f32.mrf.mxu0
  %v407 = vadd.f32 %v265, %v406
  %v408 = vpop.f32.mrf.mxu0
  %409 = vmatprep.mubr.bf16.mxu0 %v341
  %410 = vmatmul.mubr.bf16.gmra.mxu0 %v186
  %v411 = vpop.f32.mrf.mxu0
  %v412 = vadd.f32 %v265, %v411
  %v413 = vpop.f32.mrf.mxu0
  %v414 = vpop.f32.mrf.mxu0
  %v415 = vadd.f32 %v265, %v414
  %v416 = vpop.f32.mrf.mxu0
  %417 = vmatprep.mubr.bf16.mxu0 %v343
  %418 = vmatmul.mubr.bf16.gmra.mxu0 %v190
  %v419 = vpop.f32.mrf.mxu0
  %v420 = vadd.f32 %v265, %v419
  %v421 = vpop.f32.mrf.mxu0
  %v422 = vpop.f32.mrf.mxu0
  %v423 = vadd.f32 %v265, %v422
  %v424 = vpop.f32.mrf.mxu0
  %425 = vmatprep.mubr.bf16.mxu0 %v345
  %426 = vmatmul.mubr.bf16.gmra.mxu0 %v194
  %v427 = vpop.f32.mrf.mxu0
  %v428 = vadd.f32 %v265, %v427
  %v429 = vpop.f32.mrf.mxu0
  %v430 = vpop.f32.mrf.mxu0
  %v431 = vadd.f32 %v265, %v430
  %v432 = vpop.f32.mrf.mxu0
  %433 = vmatprep.mubr.bf16.mxu0 %v347
  %434 = vmatmul.mubr.bf16.gmra.mxu0 %v198
  %v435 = vpop.f32.mrf.mxu0
  %v436 = vadd.f32 %v265, %v435
  %v437 = vpop.f32.mrf.mxu0
  %v438 = vpop.f32.mrf.mxu0
  %v439 = vadd.f32 %v265, %v438
  %v440 = vpop.f32.mrf.mxu0
  %441 = vmatprep.mubr.bf16.mxu0 %v349
  %442 = vmatmul.mubr.bf16.gmra.mxu0 %v202
  %v443 = vpop.f32.mrf.mxu0
  %v444 = vadd.f32 %v265, %v443
  %v445 = vpop.f32.mrf.mxu0
  %v446 = vpop.f32.mrf.mxu0
  %v447 = vadd.f32 %v265, %v446
  %v448 = vpop.f32.mrf.mxu0
  %449 = vmatprep.mubr.bf16.mxu0 %v351
  %450 = vmatmul.mubr.bf16.gmra.mxu0 %v206
  %v451 = vpop.f32.mrf.mxu0
  %v452 = vadd.f32 %v265, %v451
  %v453 = vpop.f32.mrf.mxu0
  %v454 = vpop.f32.mrf.mxu0
  %v455 = vadd.f32 %v265, %v454
  %v456 = vpop.f32.mrf.mxu0
  %457 = vmatprep.mubr.bf16.mxu0 %v353
  %458 = vmatmul.mubr.bf16.gmra.mxu0 %v210
  %v459 = vpop.f32.mrf.mxu0
  %v460 = vadd.f32 %v265, %v459
  %v461 = vpop.f32.mrf.mxu0
  %v462 = vpop.f32.mrf.mxu0
  %v463 = vadd.f32 %v265, %v462
  %v464 = vpop.f32.mrf.mxu0
  %465 = vmatprep.mubr.bf16.mxu0 %v355
  %466 = vmatmul.mubr.bf16.gmra.mxu0 %v214
  %v467 = vpop.f32.mrf.mxu0
  %v468 = vadd.f32 %v265, %v467
  %v469 = vpop.f32.mrf.mxu0
  %v470 = vpop.f32.mrf.mxu0
  %v471 = vadd.f32 %v265, %v470
  %v472 = vpop.f32.mrf.mxu0
  %473 = vmatprep.mubr.bf16.mxu0 %v357
  %474 = vmatmul.mubr.bf16.gmra.mxu0 %v218
  %v475 = vpop.f32.mrf.mxu0
  %v476 = vadd.f32 %v265, %v475
  %v477 = vpop.f32.mrf.mxu0
  %v478 = vpop.f32.mrf.mxu0
  %v479 = vadd.f32 %v265, %v478
  %v480 = vpop.f32.mrf.mxu0
  %481 = vmatprep.mubr.bf16.mxu0 %v359
  %482 = vmatmul.mubr.bf16.gmra.mxu0 %v222
  %v483 = vpop.f32.mrf.mxu0
  %v484 = vadd.f32 %v265, %v483
  %v485 = vpop.f32.mrf.mxu0
  %v486 = vpop.f32.mrf.mxu0
  %v487 = vadd.f32 %v265, %v486
  %v488 = vpop.f32.mrf.mxu0
  %489 = vmatprep.mubr.bf16.mxu0 %v361
  %490 = vmatmul.mubr.bf16.gmra.mxu0 %v226
  %v491 = vpop.f32.mrf.mxu0
  %v492 = vadd.f32 %v265, %v491
  %v493 = vpop.f32.mrf.mxu0
  %v494 = vpop.f32.mrf.mxu0
  %v495 = vadd.f32 %v265, %v494
  %v496 = vpop.f32.mrf.mxu0
  %497 = vmatprep.mubr.bf16.mxu0 %v364
  %498 = vmatmul.mubr.bf16.gmra.mxu0 %v230
  %v499 = vpop.f32.mrf.mxu0
  %v500 = vadd.f32 %v265, %v499
  %v501 = vpop.f32.mrf.mxu0
  %v502 = vpop.f32.mrf.mxu0
  %v503 = vadd.f32 %v265, %v502
  %v504 = vpop.f32.mrf.mxu0
  %505 = vmatprep.mubr.bf16.mxu0 %v367
  %506 = vmatmul.mubr.bf16.gmra.mxu0 %v234
  %v507 = vpop.f32.mrf.mxu0
  %v508 = vadd.f32 %v265, %v507
  %v509 = vpop.f32.mrf.mxu0
  %v510 = vpop.f32.mrf.mxu0
  %v511 = vadd.f32 %v265, %v510
  %v512 = vpop.f32.mrf.mxu0
  %513 = vdwg.mxu0
  %v514 = vmax.f32 %v404, 0.0
  %v515 = vmax.f32 %v407, 0.0
  %v516 = vmax.f32 %v412, 0.0
  %v517 = vmax.f32 %v415, 0.0
  %v518 = vmax.f32 %v420, 0.0
  %v519 = vmax.f32 %v423, 0.0
  %v520 = vmax.f32 %v428, 0.0
  %v521 = vmax.f32 %v431, 0.0
  %v522 = vmax.f32 %v436, 0.0
  %v523 = vmax.f32 %v439, 0.0
  %v524 = vmax.f32 %v444, 0.0
  %v525 = vmax.f32 %v447, 0.0
  %v526 = vmax.f32 %v452, 0.0
  %v527 = vmax.f32 %v455, 0.0
  %v528 = vmax.f32 %v460, 0.0
  %v529 = vmax.f32 %v463, 0.0
  %v530 = vmax.f32 %v468, 0.0
  %v531 = vmax.f32 %v471, 0.0
  %v532 = vmax.f32 %v476, 0.0
  %v533 = vmax.f32 %v479, 0.0
  %v534 = vmax.f32 %v484, 0.0
  %v535 = vmax.f32 %v487, 0.0
  %v536 = vmax.f32 %v492, 0.0
  %v537 = vmax.f32 %v495, 0.0
  %v538 = vmax.f32 %v500, 0.0
  %v539 = vmax.f32 %v503, 0.0
  %v540 = vmax.f32 %v508, 0.0
  %v541 = vmax.f32 %v511, 0.0
  %v542 = vpack.c.bf16 %v515, %v514
  %v543 = vpack.c.bf16 %v517, %v516
  %v544 = vpack.c.bf16 %v519, %v518
  %v545 = vpack.c.bf16 %v521, %v520
  %v546 = vpack.c.bf16 %v523, %v522
  %v547 = vpack.c.bf16 %v525, %v524
  %v548 = vpack.c.bf16 %v527, %v526
  %v549 = vpack.c.bf16 %v529, %v528
  %v550 = vpack.c.bf16 %v531, %v530
  %v551 = vpack.c.bf16 %v533, %v532
  %v552 = vpack.c.bf16 %v535, %v534
  %v553 = vpack.c.bf16 %v537, %v536
  %v554 = vpack.c.bf16 %v539, %v538
  %v555 = vpack.c.bf16 %v541, %v540
  %568 = vrot.lane.b32.xlu0 %v543, 64
  %v569 = vpop.permute.xlu0 %568
  %570 = vrot.lane.b32.xlu0 %v544, 64
  %v571 = vpop.permute.xlu0 %570
  %572 = vrot.lane.b32.xlu0 %v545, 64
  %v573 = vpop.permute.xlu0 %572
  %574 = vrot.lane.b32.xlu0 %v546, 64
  %v575 = vpop.permute.xlu0 %574
  %576 = vrot.lane.b32.xlu0 %v547, 64
  %v577 = vpop.permute.xlu0 %576
  %578 = vrot.lane.b32.xlu0 %v548, 64
  %v579 = vpop.permute.xlu0 %578
  %580 = vrot.lane.b32.xlu0 %v549, 64
  %v581 = vpop.permute.xlu0 %580
  %582 = vrot.lane.b32.xlu0 %v550, 64
  %v583 = vpop.permute.xlu0 %582
  %584 = vrot.lane.b32.xlu0 %v551, 64
  %v585 = vpop.permute.xlu0 %584
  %586 = vrot.lane.b32.xlu0 %v552, 64
  %v587 = vpop.permute.xlu0 %586
  %588 = vrot.lane.b32.xlu0 %v553, 64
  %v589 = vpop.permute.xlu0 %588
  %590 = vrot.lane.b32.xlu0 %v554, 64
  %v591 = vpop.permute.xlu0 %590
  %v594 = vsel %vm179, %v542, %v569
  %v598 = vsel %vm179, %v543, %v571
  %v602 = vsel %vm179, %v544, %v573
  %v606 = vsel %vm179, %v545, %v575
  %v610 = vsel %vm179, %v546, %v577
  %v614 = vsel %vm179, %v547, %v579
  %v618 = vsel %vm179, %v548, %v581
  %v622 = vsel %vm179, %v549, %v583
  %v626 = vsel %vm179, %v550, %v585
  %v630 = vsel %vm179, %v551, %v587
  %v634 = vsel %vm179, %v552, %v589
  %v638 = vsel %vm179, %v553, %v591
  %v640 = vld [vmem:[%s3] sm:$0xf]
  %v641 = vld [vmem:[%s3 + $0x4] sm:$0xf]
  %v642 = vld [vmem:[%s3 + $0x8] sm:$0xf]
  %v643 = vld [vmem:[%s3 + $0xc] sm:$0xf]
  %v644 = vld [vmem:[%s3 + $0x10] sm:$0xf]
  %v645 = vld [vmem:[%s3 + $0x14] sm:$0xf]
  %v646 = vld [vmem:[%s3 + $0x18] sm:$0xf]
  %v647 = vld [vmem:[%s3 + $0x1c] sm:$0xf]
  %v648 = vld [vmem:[%s3 + $0x20] sm:$0xf]
  %v649 = vld [vmem:[%s3 + $0x24] sm:$0xf]
  %v650 = vld [vmem:[%s3 + $0x28] sm:$0xf]
  %v651 = vld [vmem:[%s3 + $0x2c] sm:$0xf]
  %v652 = vld [vmem:[%s3 + $0x30] sm:$0xf]
  %v653 = vld [vmem:[%s3 + $0x34] sm:$0xf]
  %v654 = vld [vmem:[%s3 + $0x38] sm:$0xf]
  %v655 = vld [vmem:[%s3 + $0x3c] sm:$0xf]
  %v656 = vld [vmem:[%s3 + $0x40] sm:$0xf]
  %v657 = vld [vmem:[%s3 + $0x44] sm:$0xf]
  %v658 = vld [vmem:[%s3 + $0x48] sm:$0xf]
  %v659 = vld [vmem:[%s3 + $0x4c] sm:$0xf]
  %v660 = vld [vmem:[%s3 + $0x50] sm:$0xf]
  %v661 = vld [vmem:[%s3 + $0x54] sm:$0xf]
  %v662 = vld [vmem:[%s3 + $0x58] sm:$0xf]
  %v663 = vld [vmem:[%s3 + $0x5c] sm:$0xf]
  %v664 = vld [vmem:[%s4] sm:$0x1]
  %v666 = vlaneseq
  %v667 = vshrl.u32 %v666, 7
  %v668 = vsub.s32 0, %v667
  %v669 = vrot.slane %v664, %v668
  %v695 = vunpack.c.l.b16 %v640
  %v696 = vunpack.c.l.b16 %v641
  %v697 = vunpack.c.l.b16 %v642
  %v698 = vunpack.c.l.b16 %v643
  %v699 = vunpack.c.l.b16 %v644
  %v700 = vunpack.c.l.b16 %v645
  %v701 = vunpack.c.l.b16 %v646
  %v702 = vunpack.c.l.b16 %v647
  %v703 = vunpack.c.l.b16 %v648
  %v704 = vunpack.c.l.b16 %v649
  %v705 = vunpack.c.l.b16 %v650
  %v706 = vunpack.c.l.b16 %v651
  %v707 = vunpack.c.l.b16 %v652
  %v708 = vunpack.c.l.b16 %v653
  %v709 = vunpack.c.l.b16 %v654
  %v710 = vunpack.c.l.b16 %v655
  %v711 = vunpack.c.l.b16 %v656
  %v712 = vunpack.c.l.b16 %v657
  %v713 = vunpack.c.l.b16 %v658
  %v714 = vunpack.c.l.b16 %v659
  %v715 = vunpack.c.l.b16 %v660
  %v716 = vunpack.c.l.b16 %v661
  %v717 = vunpack.c.l.b16 %v662
  %v718 = vunpack.c.l.b16 %v663
  %v719 = vpack.c.b16 %v696, %v695
  %v720 = vpack.c.b16 %v698, %v697
  %v721 = vpack.c.b16 %v700, %v699
  %v722 = vpack.c.b16 %v702, %v701
  %v723 = vpack.c.b16 %v704, %v703
  %v724 = vpack.c.b16 %v706, %v705
  %v725 = vpack.c.b16 %v708, %v707
  %v726 = vpack.c.b16 %v710, %v709
  %v727 = vpack.c.b16 %v712, %v711
  %v728 = vpack.c.b16 %v714, %v713
  %v729 = vpack.c.b16 %v716, %v715
  %v730 = vpack.c.b16 %v718, %v717
  %v743 = vsel %vm179, %v544, 0
  %v745 = vsel %vm179, %v545, 0
  %v747 = vsel %vm179, %v546, 0
  %v749 = vsel %vm179, %v547, 0
  %v751 = vsel %vm179, %v548, 0
  %v753 = vsel %vm179, %v549, 0
  %v755 = vsel %vm179, %v550, 0
  %v757 = vsel %vm179, %v551, 0
  %v759 = vsel %vm179, %v552, 0
  %v761 = vsel %vm179, %v553, 0
  %v764 = vsel %vm179, %v554, 0
  %v767 = vsel %vm179, %v555, 0
  %769 = vmatprep.subr.bf16.mxu0 0
  %770 = vmatpush1.bf16.msra.mxu0 %v726
  %771 = vmatprep.subr.bf16.mxu0 0
  %772 = vmatpush1.bf16.msra.mxu0 %v725
  %773 = vmatprep.subr.bf16.mxu0 0
  %774 = vmatpush1.bf16.msra.mxu0 %v724
  %775 = vmatprep.subr.bf16.mxu0 0
  %776 = vmatpush1.bf16.msra.mxu0 %v723
  %777 = vmatprep.subr.bf16.mxu0 0
  %778 = vmatpush1.bf16.msra.mxu0 %v722
  %779 = vmatprep.subr.bf16.mxu0 0
  %780 = vmatpush1.bf16.msra.mxu0 %v721
  %781 = vmatprep.subr.bf16.mxu0 0
  %782 = vmatpush1.bf16.msra.mxu0 %v720
  %783 = vmatprep.subr.bf16.mxu0 0
  %784 = vmatpush1.bf16.msra.mxu0 %v719
  %785 = vmatprep.subr.bf16.mxu0 0
  %786 = vmatpush2.bf16.msra.mxu0 0
  %787 = vmatprep.subr.bf16.mxu0 0
  %788 = vmatpush2.bf16.msra.mxu0 0
  %789 = vmatprep.subr.bf16.mxu0 0
  %790 = vmatpush2.bf16.msra.mxu0 0
  %791 = vmatprep.subr.bf16.mxu0 0
  %792 = vmatpush2.bf16.msra.mxu0 0
  %793 = vmatprep.subr.bf16.mxu0 0
  %794 = vmatpush2.bf16.msra.mxu0 %v730
  %795 = vmatprep.subr.bf16.mxu0 0
  %796 = vmatpush2.bf16.msra.mxu0 %v729
  %797 = vmatprep.subr.bf16.mxu0 0
  %798 = vmatpush2.bf16.msra.mxu0 %v728
  %799 = vmatprep.subr.bf16.mxu0 0
  %800 = vmatpush2.bf16.msra.mxu0 %v727
  %801 = vmatprep.mubr.bf16.mxu0 %v743
  %802 = vmatmul.mubr.bf16.gmra.mxu0 %v594
  %v803 = vpop.f32.mrf.mxu0
  %v804 = vadd.f32 %v669, %v803
  %v805 = vpop.f32.mrf.mxu0
  %v806 = vpop.f32.mrf.mxu0
  %v807 = vadd.f32 %v669, %v806
  %v808 = vpop.f32.mrf.mxu0
  %809 = vmatprep.mubr.bf16.mxu0 %v745
  %810 = vmatmul.mubr.bf16.gmra.mxu0 %v598
  %v811 = vpop.f32.mrf.mxu0
  %v812 = vadd.f32 %v669, %v811
  %v813 = vpop.f32.mrf.mxu0
  %v814 = vpop.f32.mrf.mxu0
  %v815 = vadd.f32 %v669, %v814
  %v816 = vpop.f32.mrf.mxu0
  %817 = vmatprep.mubr.bf16.mxu0 %v747
  %818 = vmatmul.mubr.bf16.gmra.mxu0 %v602
  %v819 = vpop.f32.mrf.mxu0
  %v820 = vadd.f32 %v669, %v819
  %v821 = vpop.f32.mrf.mxu0
  %v822 = vpop.f32.mrf.mxu0
  %v823 = vadd.f32 %v669, %v822
  %v824 = vpop.f32.mrf.mxu0
  %825 = vmatprep.mubr.bf16.mxu0 %v749
  %826 = vmatmul.mubr.bf16.gmra.mxu0 %v606
  %v827 = vpop.f32.mrf.mxu0
  %v828 = vadd.f32 %v669, %v827
  %v829 = vpop.f32.mrf.mxu0
  %v830 = vpop.f32.mrf.mxu0
  %v831 = vadd.f32 %v669, %v830
  %v832 = vpop.f32.mrf.mxu0
  %833 = vmatprep.mubr.bf16.mxu0 %v751
  %834 = vmatmul.mubr.bf16.gmra.mxu0 %v610
  %v835 = vpop.f32.mrf.mxu0
  %v836 = vadd.f32 %v669, %v835
  %v837 = vpop.f32.mrf.mxu0
  %v838 = vpop.f32.mrf.mxu0
  %v839 = vadd.f32 %v669, %v838
  %v840 = vpop.f32.mrf.mxu0
  %841 = vmatprep.mubr.bf16.mxu0 %v753
  %842 = vmatmul.mubr.bf16.gmra.mxu0 %v614
  %v843 = vpop.f32.mrf.mxu0
  %v844 = vadd.f32 %v669, %v843
  %v845 = vpop.f32.mrf.mxu0
  %v846 = vpop.f32.mrf.mxu0
  %v847 = vadd.f32 %v669, %v846
  %v848 = vpop.f32.mrf.mxu0
  %849 = vmatprep.mubr.bf16.mxu0 %v755
  %850 = vmatmul.mubr.bf16.gmra.mxu0 %v618
  %v851 = vpop.f32.mrf.mxu0
  %v852 = vadd.f32 %v669, %v851
  %v853 = vpop.f32.mrf.mxu0
  %v854 = vpop.f32.mrf.mxu0
  %v855 = vadd.f32 %v669, %v854
  %v856 = vpop.f32.mrf.mxu0
  %857 = vmatprep.mubr.bf16.mxu0 %v757
  %858 = vmatmul.mubr.bf16.gmra.mxu0 %v622
  %v859 = vpop.f32.mrf.mxu0
  %v860 = vadd.f32 %v669, %v859
  %v861 = vpop.f32.mrf.mxu0
  %v862 = vpop.f32.mrf.mxu0
  %v863 = vadd.f32 %v669, %v862
  %v864 = vpop.f32.mrf.mxu0
  %865 = vmatprep.mubr.bf16.mxu0 %v759
  %866 = vmatmul.mubr.bf16.gmra.mxu0 %v626
  %v867 = vpop.f32.mrf.mxu0
  %v868 = vadd.f32 %v669, %v867
  %v869 = vpop.f32.mrf.mxu0
  %v870 = vpop.f32.mrf.mxu0
  %v871 = vadd.f32 %v669, %v870
  %v872 = vpop.f32.mrf.mxu0
  %873 = vmatprep.mubr.bf16.mxu0 %v761
  %874 = vmatmul.mubr.bf16.gmra.mxu0 %v630
  %v875 = vpop.f32.mrf.mxu0
  %v876 = vadd.f32 %v669, %v875
  %v877 = vpop.f32.mrf.mxu0
  %v878 = vpop.f32.mrf.mxu0
  %v879 = vadd.f32 %v669, %v878
  %v880 = vpop.f32.mrf.mxu0
  %881 = vmatprep.mubr.bf16.mxu0 %v764
  %882 = vmatmul.mubr.bf16.gmra.mxu0 %v634
  %v883 = vpop.f32.mrf.mxu0
  %v884 = vadd.f32 %v669, %v883
  %v885 = vpop.f32.mrf.mxu0
  %v886 = vpop.f32.mrf.mxu0
  %v887 = vadd.f32 %v669, %v886
  %v888 = vpop.f32.mrf.mxu0
  %889 = vmatprep.mubr.bf16.mxu0 %v767
  %890 = vmatmul.mubr.bf16.gmra.mxu0 %v638
  %v891 = vpop.f32.mrf.mxu0
  %v892 = vadd.f32 %v669, %v891
  %v893 = vpop.f32.mrf.mxu0
  %v894 = vpop.f32.mrf.mxu0
  %v895 = vadd.f32 %v669, %v894
  %v896 = vpop.f32.mrf.mxu0
  %897 = vdwg.mxu0
  %v898 = vmax.f32 %v804, 0.0
  %v899 = vmax.f32 %v807, 0.0
  %v900 = vmax.f32 %v812, 0.0
  %v901 = vmax.f32 %v815, 0.0
  %v902 = vmax.f32 %v820, 0.0
  %v903 = vmax.f32 %v823, 0.0
  %v904 = vmax.f32 %v828, 0.0
  %v905 = vmax.f32 %v831, 0.0
  %v906 = vmax.f32 %v836, 0.0
  %v907 = vmax.f32 %v839, 0.0
  %v908 = vmax.f32 %v844, 0.0
  %v909 = vmax.f32 %v847, 0.0
  %v910 = vmax.f32 %v852, 0.0
  %v911 = vmax.f32 %v855, 0.0
  %v912 = vmax.f32 %v860, 0.0
  %v913 = vmax.f32 %v863, 0.0
  %v914 = vmax.f32 %v868, 0.0
  %v915 = vmax.f32 %v871, 0.0
  %v916 = vmax.f32 %v876, 0.0
  %v917 = vmax.f32 %v879, 0.0
  %v918 = vmax.f32 %v884, 0.0
  %v919 = vmax.f32 %v887, 0.0
  %v920 = vmax.f32 %v892, 0.0
  %v921 = vmax.f32 %v895, 0.0
  %v922 = vpack.c.bf16 %v899, %v898
  %v923 = vpack.c.bf16 %v901, %v900
  %v924 = vpack.c.bf16 %v903, %v902
  %v925 = vpack.c.bf16 %v905, %v904
  %v926 = vpack.c.bf16 %v907, %v906
  %v927 = vpack.c.bf16 %v909, %v908
  %v928 = vpack.c.bf16 %v911, %v910
  %v929 = vpack.c.bf16 %v913, %v912
  %v930 = vpack.c.bf16 %v915, %v914
  %v931 = vpack.c.bf16 %v917, %v916
  %v932 = vpack.c.bf16 %v919, %v918
  %v933 = vpack.c.bf16 %v921, %v920
  %935 = vrot.lane.b32.xlu0 %v923, 64
  %v936 = vpop.permute.xlu0 %935
  %938 = vrot.lane.b32.xlu0 %v925, 64
  %v939 = vpop.permute.xlu0 %938
  %941 = vrot.lane.b32.xlu0 %v927, 64
  %v942 = vpop.permute.xlu0 %941
  %944 = vrot.lane.b32.xlu0 %v929, 64
  %v945 = vpop.permute.xlu0 %944
  %947 = vrot.lane.b32.xlu0 %v931, 64
  %v948 = vpop.permute.xlu0 %947
  %950 = vrot.lane.b32.xlu0 %v933, 64
  %v951 = vpop.permute.xlu0 %950
  %v954 = vsel %vm179, %v922, %v936
  %v958 = vsel %vm179, %v924, %v939
  %v962 = vsel %vm179, %v926, %v942
  %v966 = vsel %vm179, %v928, %v945
  %v970 = vsel %vm179, %v930, %v948
  %v974 = vsel %vm179, %v932, %v951
  %v976 = vld [vmem:[%s5] sm:$0xf]
  %v977 = vld [vmem:[%s5 + $0x4] sm:$0xf]
  %v978 = vld [vmem:[%s5 + $0x8] sm:$0xf]
  %v979 = vld [vmem:[%s5 + $0xc] sm:$0xf]
  %v980 = vld [vmem:[%s5 + $0x10] sm:$0xf]
  %v981 = vld [vmem:[%s5 + $0x14] sm:$0xf]
  %v982 = vld [vmem:[%s5 + $0x18] sm:$0xf]
  %v983 = vld [vmem:[%s5 + $0x1c] sm:$0xf]
  %v984 = vld [vmem:[%s5 + $0x20] sm:$0xf]
  %v985 = vld [vmem:[%s5 + $0x24] sm:$0xf]
  %v986 = vld [vmem:[%s5 + $0x28] sm:$0xf]
  %v987 = vld [vmem:[%s5 + $0x2c] sm:$0xf]
  %v988 = vld [vmem:[%s5 + $0x30] sm:$0xf]
  %v989 = vld [vmem:[%s5 + $0x34] sm:$0xf]
  %v990 = vld [vmem:[%s5 + $0x38] sm:$0xf]
  %v991 = vld [vmem:[%s5 + $0x3c] sm:$0xf]
  %v992 = vld [vmem:[%s5 + $0x40] sm:$0xf]
  %v993 = vld [vmem:[%s5 + $0x44] sm:$0xf]
  %v994 = vld [vmem:[%s5 + $0x48] sm:$0xf]
  %v995 = vld [vmem:[%s5 + $0x4c] sm:$0xf]
  %v996 = vld [vmem:[%s5 + $0x50] sm:$0xf]
  %v997 = vld [vmem:[%s5 + $0x54] sm:$0xf]
  %v998 = vld [vmem:[%s5 + $0x58] sm:$0xf]
  %v999 = vld [vmem:[%s5 + $0x5c] sm:$0xf]
  %v1000 = vld [vmem:[%s5 + $0x60] sm:$0xf]
  %v1001 = vld [vmem:[%s5 + $0x64] sm:$0xf]
  %v1002 = vld [vmem:[%s5 + $0x68] sm:$0xf]
  %v1003 = vld [vmem:[%s5 + $0x6c] sm:$0xf]
  %v1004 = vld [vmem:[%s5 + $0x70] sm:$0xf]
  %v1005 = vld [vmem:[%s5 + $0x74] sm:$0xf]
  %v1006 = vld [vmem:[%s5 + $0x78] sm:$0xf]
  %v1007 = vld [vmem:[%s5 + $0x7c] sm:$0xf]
  %v1008 = vld [vmem:[%s5 + $0x80] sm:$0xf]
  %v1009 = vld [vmem:[%s5 + $0x84] sm:$0xf]
  %v1010 = vld [vmem:[%s5 + $0x88] sm:$0xf]
  %v1011 = vld [vmem:[%s5 + $0x8c] sm:$0xf]
  %v1012 = vld [vmem:[%s5 + $0x90] sm:$0xf]
  %v1013 = vld [vmem:[%s5 + $0x94] sm:$0xf]
  %v1014 = vld [vmem:[%s5 + $0x98] sm:$0xf]
  %v1015 = vld [vmem:[%s5 + $0x9c] sm:$0xf]
  %v1016 = vld [vmem:[%s5 + $0xa0] sm:$0xf]
  %v1017 = vld [vmem:[%s5 + $0xa4] sm:$0xf]
  %v1018 = vld [vmem:[%s5 + $0xa8] sm:$0xf]
  %v1019 = vld [vmem:[%s5 + $0xac] sm:$0xf]
  %v1020 = vld [vmem:[%s5 + $0xb0] sm:$0xf]
  %v1021 = vld [vmem:[%s5 + $0xb4] sm:$0xf]
  %v1022 = vld [vmem:[%s5 + $0xb8] sm:$0xf]
  %v1023 = vld [vmem:[%s5 + $0xbc] sm:$0xf]
  %v1024 = vld [vmem:[%s5 + $0xc0] sm:$0xf]
  %v1025 = vld [vmem:[%s5 + $0xc4] sm:$0xf]
  %v1026 = vld [vmem:[%s5 + $0xc8] sm:$0xf]
  %v1027 = vld [vmem:[%s5 + $0xcc] sm:$0xf]
  %v1028 = vld [vmem:[%s5 + $0xd0] sm:$0xf]
  %v1029 = vld [vmem:[%s5 + $0xd4] sm:$0xf]
  %v1030 = vld [vmem:[%s5 + $0xd8] sm:$0xf]
  %v1031 = vld [vmem:[%s5 + $0xdc] sm:$0xf]
  %v1032 = vld [vmem:[%s5 + $0xe0] sm:$0xf]
  %v1033 = vld [vmem:[%s5 + $0xe4] sm:$0xf]
  %v1034 = vld [vmem:[%s5 + $0xe8] sm:$0xf]
  %v1035 = vld [vmem:[%s5 + $0xec] sm:$0xf]
  %v1036 = vld [vmem:[%s5 + $0xf0] sm:$0xf]
  %v1037 = vld [vmem:[%s5 + $0xf4] sm:$0xf]
  %v1038 = vld [vmem:[%s5 + $0xf8] sm:$0xf]
  %v1039 = vld [vmem:[%s5 + $0xfc] sm:$0xf]
  %v1040 = vld [vmem:[%s5 + $0x100] sm:$0xf]
  %v1041 = vld [vmem:[%s5 + $0x104] sm:$0xf]
  %v1042 = vld [vmem:[%s5 + $0x108] sm:$0xf]
  %v1043 = vld [vmem:[%s5 + $0x10c] sm:$0xf]
  %v1044 = vld [vmem:[%s5 + $0x110] sm:$0xf]
  %v1045 = vld [vmem:[%s5 + $0x114] sm:$0xf]
  %v1046 = vld [vmem:[%s5 + $0x118] sm:$0xf]
  %v1047 = vld [vmem:[%s5 + $0x11c] sm:$0xf]
  %v1048 = vld [vmem:[%s5 + $0x120] sm:$0xf]
  %v1049 = vld [vmem:[%s5 + $0x124] sm:$0xf]
  %v1050 = vld [vmem:[%s5 + $0x128] sm:$0xf]
  %v1051 = vld [vmem:[%s5 + $0x12c] sm:$0xf]
  %v1052 = vld [vmem:[%s5 + $0x130] sm:$0xf]
  %v1053 = vld [vmem:[%s5 + $0x134] sm:$0xf]
  %v1054 = vld [vmem:[%s5 + $0x138] sm:$0xf]
  %v1055 = vld [vmem:[%s5 + $0x13c] sm:$0xf]
  %v1056 = vld [vmem:[%s5 + $0x140] sm:$0xf]
  %v1057 = vld [vmem:[%s5 + $0x144] sm:$0xf]
  %v1058 = vld [vmem:[%s5 + $0x148] sm:$0xf]
  %v1059 = vld [vmem:[%s5 + $0x14c] sm:$0xf]
  %v1060 = vld [vmem:[%s5 + $0x150] sm:$0xf]
  %v1061 = vld [vmem:[%s5 + $0x154] sm:$0xf]
  %v1062 = vld [vmem:[%s5 + $0x158] sm:$0xf]
  %v1063 = vld [vmem:[%s5 + $0x15c] sm:$0xf]
  %v1064 = vld [vmem:[%s5 + $0x160] sm:$0xf]
  %v1065 = vld [vmem:[%s5 + $0x164] sm:$0xf]
  %v1066 = vld [vmem:[%s5 + $0x168] sm:$0xf]
  %v1067 = vld [vmem:[%s5 + $0x16c] sm:$0xf]
  %v1068 = vld [vmem:[%s5 + $0x170] sm:$0xf]
  %v1069 = vld [vmem:[%s5 + $0x174] sm:$0xf]
  %v1070 = vld [vmem:[%s5 + $0x178] sm:$0xf]
  %v1071 = vld [vmem:[%s5 + $0x17c] sm:$0xf]
  %v1072 = vld [vmem:[%s6] sm:$0x1]
  %v1074 = vlaneseq
  %v1075 = vshrl.u32 %v1074, 7
  %v1076 = vsub.s32 0, %v1075
  %v1077 = vrot.slane %v1072, %v1076
  %v1175 = vunpack.c.l.b16 %v976
  %v1176 = vunpack.c.l.b16 %v977
  %v1177 = vunpack.c.l.b16 %v978
  %v1178 = vunpack.c.l.b16 %v979
  %v1179 = vunpack.c.l.b16 %v980
  %v1180 = vunpack.c.l.b16 %v981
  %v1181 = vunpack.c.l.b16 %v982
  %v1182 = vunpack.c.l.b16 %v983
  %v1183 = vunpack.c.l.b16 %v984
  %v1184 = vunpack.c.l.b16 %v985
  %v1185 = vunpack.c.l.b16 %v986
  %v1186 = vunpack.c.l.b16 %v987
  %v1187 = vunpack.c.l.b16 %v988
  %v1188 = vunpack.c.l.b16 %v989
  %v1189 = vunpack.c.l.b16 %v990
  %v1190 = vunpack.c.l.b16 %v991
  %v1191 = vunpack.c.l.b16 %v992
  %v1192 = vunpack.c.l.b16 %v993
  %v1193 = vunpack.c.l.b16 %v994
  %v1194 = vunpack.c.l.b16 %v995
  %v1195 = vunpack.c.l.b16 %v996
  %v1196 = vunpack.c.l.b16 %v997
  %v1197 = vunpack.c.l.b16 %v998
  %v1198 = vunpack.c.l.b16 %v999
  %v1199 = vunpack.c.l.b16 %v1000
  %v1200 = vunpack.c.l.b16 %v1001
  %v1201 = vunpack.c.l.b16 %v1002
  %v1202 = vunpack.c.l.b16 %v1003
  %v1203 = vunpack.c.l.b16 %v1004
  %v1204 = vunpack.c.l.b16 %v1005
  %v1205 = vunpack.c.l.b16 %v1006
  %v1206 = vunpack.c.l.b16 %v1007
  %v1207 = vunpack.c.l.b16 %v1008
  %v1208 = vunpack.c.l.b16 %v1009
  %v1209 = vunpack.c.l.b16 %v1010
  %v1210 = vunpack.c.l.b16 %v1011
  %v1211 = vunpack.c.l.b16 %v1012
  %v1212 = vunpack.c.l.b16 %v1013
  %v1213 = vunpack.c.l.b16 %v1014
  %v1214 = vunpack.c.l.b16 %v1015
  %v1215 = vunpack.c.l.b16 %v1016
  %v1216 = vunpack.c.l.b16 %v1017
  %v1217 = vunpack.c.l.b16 %v1018
  %v1218 = vunpack.c.l.b16 %v1019
  %v1219 = vunpack.c.l.b16 %v1020
  %v1220 = vunpack.c.l.b16 %v1021
  %v1221 = vunpack.c.l.b16 %v1022
  %v1222 = vunpack.c.l.b16 %v1023
  %v1223 = vunpack.c.l.b16 %v1024
  %v1224 = vunpack.c.l.b16 %v1025
  %v1225 = vunpack.c.l.b16 %v1026
  %v1226 = vunpack.c.l.b16 %v1027
  %v1227 = vunpack.c.l.b16 %v1028
  %v1228 = vunpack.c.l.b16 %v1029
  %v1229 = vunpack.c.l.b16 %v1030
  %v1230 = vunpack.c.l.b16 %v1031
  %v1231 = vunpack.c.l.b16 %v1032
  %v1232 = vunpack.c.l.b16 %v1033
  %v1233 = vunpack.c.l.b16 %v1034
  %v1234 = vunpack.c.l.b16 %v1035
  %v1235 = vunpack.c.l.b16 %v1036
  %v1236 = vunpack.c.l.b16 %v1037
  %v1237 = vunpack.c.l.b16 %v1038
  %v1238 = vunpack.c.l.b16 %v1039
  %v1239 = vunpack.c.l.b16 %v1040
  %v1240 = vunpack.c.l.b16 %v1041
  %v1241 = vunpack.c.l.b16 %v1042
  %v1242 = vunpack.c.l.b16 %v1043
  %v1243 = vunpack.c.l.b16 %v1044
  %v1244 = vunpack.c.l.b16 %v1045
  %v1245 = vunpack.c.l.b16 %v1046
  %v1246 = vunpack.c.l.b16 %v1047
  %v1247 = vunpack.c.l.b16 %v1048
  %v1248 = vunpack.c.l.b16 %v1049
  %v1249 = vunpack.c.l.b16 %v1050
  %v1250 = vunpack.c.l.b16 %v1051
  %v1251 = vunpack.c.l.b16 %v1052
  %v1252 = vunpack.c.l.b16 %v1053
  %v1253 = vunpack.c.l.b16 %v1054
  %v1254 = vunpack.c.l.b16 %v1055
  %v1255 = vunpack.c.l.b16 %v1056
  %v1256 = vunpack.c.l.b16 %v1057
  %v1257 = vunpack.c.l.b16 %v1058
  %v1258 = vunpack.c.l.b16 %v1059
  %v1259 = vunpack.c.l.b16 %v1060
  %v1260 = vunpack.c.l.b16 %v1061
  %v1261 = vunpack.c.l.b16 %v1062
  %v1262 = vunpack.c.l.b16 %v1063
  %v1263 = vunpack.c.l.b16 %v1064
  %v1264 = vunpack.c.l.b16 %v1065
  %v1265 = vunpack.c.l.b16 %v1066
  %v1266 = vunpack.c.l.b16 %v1067
  %v1267 = vunpack.c.l.b16 %v1068
  %v1268 = vunpack.c.l.b16 %v1069
  %v1269 = vunpack.c.l.b16 %v1070
  %v1270 = vunpack.c.l.b16 %v1071
  %v1271 = vpack.c.b16 %v1176, %v1175
  %v1272 = vpack.c.b16 %v1178, %v1177
  %v1273 = vpack.c.b16 %v1180, %v1179
  %v1274 = vpack.c.b16 %v1182, %v1181
  %v1275 = vpack.c.b16 %v1184, %v1183
  %v1276 = vpack.c.b16 %v1186, %v1185
  %v1277 = vpack.c.b16 %v1188, %v1187
  %v1278 = vpack.c.b16 %v1190, %v1189
  %v1279 = vpack.c.b16 %v1192, %v1191
  %v1280 = vpack.c.b16 %v1194, %v1193
  %v1281 = vpack.c.b16 %v1196, %v1195
  %v1282 = vpack.c.b16 %v1198, %v1197
  %v1283 = vpack.c.b16 %v1200, %v1199
  %v1284 = vpack.c.b16 %v1202, %v1201
  %v1285 = vpack.c.b16 %v1204, %v1203
  %v1286 = vpack.c.b16 %v1206, %v1205
  %v1287 = vpack.c.b16 %v1208, %v1207
  %v1288 = vpack.c.b16 %v1210, %v1209
  %v1289 = vpack.c.b16 %v1212, %v1211
  %v1290 = vpack.c.b16 %v1214, %v1213
  %v1291 = vpack.c.b16 %v1216, %v1215
  %v1292 = vpack.c.b16 %v1218, %v1217
  %v1293 = vpack.c.b16 %v1220, %v1219
  %v1294 = vpack.c.b16 %v1222, %v1221
  %v1295 = vpack.c.b16 %v1224, %v1223
  %v1296 = vpack.c.b16 %v1226, %v1225
  %v1297 = vpack.c.b16 %v1228, %v1227
  %v1298 = vpack.c.b16 %v1230, %v1229
  %v1299 = vpack.c.b16 %v1232, %v1231
  %v1300 = vpack.c.b16 %v1234, %v1233
  %v1301 = vpack.c.b16 %v1236, %v1235
  %v1302 = vpack.c.b16 %v1238, %v1237
  %v1303 = vpack.c.b16 %v1240, %v1239
  %v1304 = vpack.c.b16 %v1242, %v1241
  %v1305 = vpack.c.b16 %v1244, %v1243
  %v1306 = vpack.c.b16 %v1246, %v1245
  %v1307 = vpack.c.b16 %v1248, %v1247
  %v1308 = vpack.c.b16 %v1250, %v1249
  %v1309 = vpack.c.b16 %v1252, %v1251
  %v1310 = vpack.c.b16 %v1254, %v1253
  %v1311 = vpack.c.b16 %v1256, %v1255
  %v1312 = vpack.c.b16 %v1258, %v1257
  %v1313 = vpack.c.b16 %v1260, %v1259
  %v1314 = vpack.c.b16 %v1262, %v1261
  %v1315 = vpack.c.b16 %v1264, %v1263
  %v1316 = vpack.c.b16 %v1266, %v1265
  %v1317 = vpack.c.b16 %v1268, %v1267
  %v1318 = vpack.c.b16 %v1270, %v1269
  %1367 = vmatprep.subr.bf16.mxu0 0
  %1368 = vmatpush1.bf16.msra.mxu0 %v1278
  %1369 = vmatprep.subr.bf16.mxu0 0
  %1370 = vmatpush1.bf16.msra.mxu0 %v1277
  %1371 = vmatprep.subr.bf16.mxu0 0
  %1372 = vmatpush1.bf16.msra.mxu0 %v1276
  %1373 = vmatprep.subr.bf16.mxu0 0
  %1374 = vmatpush1.bf16.msra.mxu0 %v1275
  %1375 = vmatprep.subr.bf16.mxu0 0
  %1376 = vmatpush1.bf16.msra.mxu0 %v1274
  %1377 = vmatprep.subr.bf16.mxu0 0
  %1378 = vmatpush1.bf16.msra.mxu0 %v1273
  %1379 = vmatprep.subr.bf16.mxu0 0
  %1380 = vmatpush1.bf16.msra.mxu0 %v1272
  %1381 = vmatprep.subr.bf16.mxu0 0
  %1382 = vmatpush1.bf16.msra.mxu0 %v1271
  %1383 = vmatprep.subr.bf16.mxu0 0
  %1384 = vmatpush2.bf16.msra.mxu0 %v1286
  %1385 = vmatprep.subr.bf16.mxu0 0
  %1386 = vmatpush2.bf16.msra.mxu0 %v1285
  %1387 = vmatprep.subr.bf16.mxu0 0
  %1388 = vmatpush2.bf16.msra.mxu0 %v1284
  %1389 = vmatprep.subr.bf16.mxu0 0
  %1390 = vmatpush2.bf16.msra.mxu0 %v1283
  %1391 = vmatprep.subr.bf16.mxu0 0
  %1392 = vmatpush2.bf16.msra.mxu0 %v1282
  %1393 = vmatprep.subr.bf16.mxu0 0
  %1394 = vmatpush2.bf16.msra.mxu0 %v1281
  %1395 = vmatprep.subr.bf16.mxu0 0
  %1396 = vmatpush2.bf16.msra.mxu0 %v1280
  %1397 = vmatprep.subr.bf16.mxu0 0
  %1398 = vmatpush2.bf16.msra.mxu0 %v1279
  %1399 = vmatprep.mubr.bf16.mxu0 %v958
  %1400 = vmatmul.mubr.bf16.gmra.mxu0 %v954
  %v1401 = vpop.f32.mrf.mxu0
  %v1402 = vadd.f32 %v1077, %v1401
  %v1403 = vpop.f32.mrf.mxu0
  %v1404 = vpop.f32.mrf.mxu0
  %v1405 = vadd.f32 %v1077, %v1404
  %v1406 = vpop.f32.mrf.mxu0
  %1407 = vdwg.mxu0
  %1408 = vmatprep.subr.bf16.mxu0 0
  %1409 = vmatpush1.bf16.msra.mxu0 %v1294
  %1410 = vmatprep.subr.bf16.mxu0 0
  %1411 = vmatpush1.bf16.msra.mxu0 %v1293
  %1412 = vmatprep.subr.bf16.mxu0 0
  %1413 = vmatpush1.bf16.msra.mxu0 %v1292
  %1414 = vmatprep.subr.bf16.mxu0 0
  %1415 = vmatpush1.bf16.msra.mxu0 %v1291
  %1416 = vmatprep.subr.bf16.mxu0 0
  %1417 = vmatpush1.bf16.msra.mxu0 %v1290
  %1418 = vmatprep.subr.bf16.mxu0 0
  %1419 = vmatpush1.bf16.msra.mxu0 %v1289
  %1420 = vmatprep.subr.bf16.mxu0 0
  %1421 = vmatpush1.bf16.msra.mxu0 %v1288
  %1422 = vmatprep.subr.bf16.mxu0 0
  %1423 = vmatpush1.bf16.msra.mxu0 %v1287
  %1424 = vmatprep.subr.bf16.mxu0 0
  %1425 = vmatpush2.bf16.msra.mxu0 %v1302
  %1426 = vmatprep.subr.bf16.mxu0 0
  %1427 = vmatpush2.bf16.msra.mxu0 %v1301
  %1428 = vmatprep.subr.bf16.mxu0 0
  %1429 = vmatpush2.bf16.msra.mxu0 %v1300
  %1430 = vmatprep.subr.bf16.mxu0 0
  %1431 = vmatpush2.bf16.msra.mxu0 %v1299
  %1432 = vmatprep.subr.bf16.mxu0 0
  %1433 = vmatpush2.bf16.msra.mxu0 %v1298
  %1434 = vmatprep.subr.bf16.mxu0 0
  %1435 = vmatpush2.bf16.msra.mxu0 %v1297
  %1436 = vmatprep.subr.bf16.mxu0 0
  %1437 = vmatpush2.bf16.msra.mxu0 %v1296
  %1438 = vmatprep.subr.bf16.mxu0 0
  %1439 = vmatpush2.bf16.msra.mxu0 %v1295
  %1440 = vmatprep.mubr.bf16.mxu0 %v966
  %1441 = vmatmul.mubr.bf16.gmra.mxu0 %v962
  %v1442 = vpop.f32.mrf.mxu0
  %v1443 = vadd.f32 %v1402, %v1442
  %v1444 = vpop.f32.mrf.mxu0
  %v1445 = vpop.f32.mrf.mxu0
  %v1446 = vadd.f32 %v1405, %v1445
  %v1447 = vpop.f32.mrf.mxu0
  %1448 = vdwg.mxu0
  %1449 = vmatprep.subr.bf16.mxu0 0
  %1450 = vmatpush1.bf16.msra.mxu0 %v1310
  %1451 = vmatprep.subr.bf16.mxu0 0
  %1452 = vmatpush1.bf16.msra.mxu0 %v1309
  %1453 = vmatprep.subr.bf16.mxu0 0
  %1454 = vmatpush1.bf16.msra.mxu0 %v1308
  %1455 = vmatprep.subr.bf16.mxu0 0
  %1456 = vmatpush1.bf16.msra.mxu0 %v1307
  %1457 = vmatprep.subr.bf16.mxu0 0
  %1458 = vmatpush1.bf16.msra.mxu0 %v1306
  %1459 = vmatprep.subr.bf16.mxu0 0
  %1460 = vmatpush1.bf16.msra.mxu0 %v1305
  %1461 = vmatprep.subr.bf16.mxu0 0
  %1462 = vmatpush1.bf16.msra.mxu0 %v1304
  %1463 = vmatprep.subr.bf16.mxu0 0
  %1464 = vmatpush1.bf16.msra.mxu0 %v1303
  %1465 = vmatprep.subr.bf16.mxu0 0
  %1466 = vmatpush2.bf16.msra.mxu0 %v1318
  %1467 = vmatprep.subr.bf16.mxu0 0
  %1468 = vmatpush2.bf16.msra.mxu0 %v1317
  %1469 = vmatprep.subr.bf16.mxu0 0
  %1470 = vmatpush2.bf16.msra.mxu0 %v1316
  %1471 = vmatprep.subr.bf16.mxu0 0
  %1472 = vmatpush2.bf16.msra.mxu0 %v1315
  %1473 = vmatprep.subr.bf16.mxu0 0
  %1474 = vmatpush2.bf16.msra.mxu0 %v1314
  %1475 = vmatprep.subr.bf16.mxu0 0
  %1476 = vmatpush2.bf16.msra.mxu0 %v1313
  %1477 = vmatprep.subr.bf16.mxu0 0
  %1478 = vmatpush2.bf16.msra.mxu0 %v1312
  %1479 = vmatprep.subr.bf16.mxu0 0
  %1480 = vmatpush2.bf16.msra.mxu0 %v1311
  %1481 = vmatprep.mubr.bf16.mxu0 %v974
  %1482 = vmatmul.mubr.bf16.gmra.mxu0 %v970
  %v1483 = vpop.f32.mrf.mxu0
  %v1484 = vadd.f32 %v1443, %v1483
  %v1485 = vpop.f32.mrf.mxu0
  %v1486 = vpop.f32.mrf.mxu0
  %v1487 = vadd.f32 %v1446, %v1486
  %v1488 = vpop.f32.mrf.mxu0
  %1489 = vdwg.mxu0
  %v1490 = vmax.f32 %v1484, 0.0
  %v1491 = vmax.f32 %v1487, 0.0
  %v1492 = vpack.c.bf16 %v1491, %v1490
  %v1493 = vld [vmem:[%s7] sm:$0xf]
  %v1494 = vld [vmem:[%s7 + $0x4] sm:$0xf]
  %v1495 = vld [vmem:[%s7 + $0x8] sm:$0xf]
  %v1496 = vld [vmem:[%s7 + $0xc] sm:$0xf]
  %v1497 = vld [vmem:[%s7 + $0x10] sm:$0xf]
  %v1498 = vld [vmem:[%s7 + $0x14] sm:$0xf]
  %v1499 = vld [vmem:[%s7 + $0x18] sm:$0xf]
  %v1500 = vld [vmem:[%s7 + $0x1c] sm:$0xf]
  %v1501 = vld [vmem:[%s7 + $0x20] sm:$0xf]
  %v1502 = vld [vmem:[%s7 + $0x24] sm:$0xf]
  %v1503 = vld [vmem:[%s7 + $0x28] sm:$0xf]
  %v1504 = vld [vmem:[%s7 + $0x2c] sm:$0xf]
  %v1505 = vld [vmem:[%s7 + $0x30] sm:$0xf]
  %v1506 = vld [vmem:[%s7 + $0x34] sm:$0xf]
  %v1507 = vld [vmem:[%s7 + $0x38] sm:$0xf]
  %v1508 = vld [vmem:[%s7 + $0x3c] sm:$0xf]
  %v1509 = vld [vmem:[%s8] sm:$0x1]
  %v1511 = vlaneseq
  %v1512 = vshrl.u32 %v1511, 7
  %v1513 = vsub.s32 0, %v1512
  %v1514 = vrot.slane %v1509, %v1513
  %v1532 = vunpack.c.l.b16 %v1493
  %v1533 = vunpack.c.l.b16 %v1494
  %v1534 = vunpack.c.l.b16 %v1495
  %v1535 = vunpack.c.l.b16 %v1496
  %v1536 = vunpack.c.l.b16 %v1497
  %v1537 = vunpack.c.l.b16 %v1498
  %v1538 = vunpack.c.l.b16 %v1499
  %v1539 = vunpack.c.l.b16 %v1500
  %v1540 = vunpack.c.l.b16 %v1501
  %v1541 = vunpack.c.l.b16 %v1502
  %v1542 = vunpack.c.l.b16 %v1503
  %v1543 = vunpack.c.l.b16 %v1504
  %v1544 = vunpack.c.l.b16 %v1505
  %v1545 = vunpack.c.l.b16 %v1506
  %v1546 = vunpack.c.l.b16 %v1507
  %v1547 = vunpack.c.l.b16 %v1508
  %v1548 = vpack.c.b16 %v1533, %v1532
  %v1549 = vpack.c.b16 %v1535, %v1534
  %v1550 = vpack.c.b16 %v1537, %v1536
  %v1551 = vpack.c.b16 %v1539, %v1538
  %v1552 = vpack.c.b16 %v1541, %v1540
  %v1553 = vpack.c.b16 %v1543, %v1542
  %v1554 = vpack.c.b16 %v1545, %v1544
  %v1555 = vpack.c.b16 %v1547, %v1546
  %1564 = vmatprep.subr.bf16.mxu0 0
  %1565 = vmatpush1.bf16.msra.mxu0 %v1555
  %1566 = vmatprep.subr.bf16.mxu0 0
  %1567 = vmatpush1.bf16.msra.mxu0 %v1554
  %1568 = vmatprep.subr.bf16.mxu0 0
  %1569 = vmatpush1.bf16.msra.mxu0 %v1553
  %1570 = vmatprep.subr.bf16.mxu0 0
  %1571 = vmatpush1.bf16.msra.mxu0 %v1552
  %1572 = vmatprep.subr.bf16.mxu0 0
  %1573 = vmatpush1.bf16.msra.mxu0 %v1551
  %1574 = vmatprep.subr.bf16.mxu0 0
  %1575 = vmatpush1.bf16.msra.mxu0 %v1550
  %1576 = vmatprep.subr.bf16.mxu0 0
  %1577 = vmatpush1.bf16.msra.mxu0 %v1549
  %1578 = vmatprep.subr.bf16.mxu0 0
  %1579 = vmatpush1.bf16.msra.mxu0 %v1548
  %1580 = vmatprep.subr.bf16.mxu0 0
  %1581 = vmatpush2.bf16.msra.mxu0 0
  %1582 = vmatprep.subr.bf16.mxu0 0
  %1583 = vmatpush2.bf16.msra.mxu0 0
  %1584 = vmatprep.subr.bf16.mxu0 0
  %1585 = vmatpush2.bf16.msra.mxu0 0
  %1586 = vmatprep.subr.bf16.mxu0 0
  %1587 = vmatpush2.bf16.msra.mxu0 0
  %1588 = vmatprep.subr.bf16.mxu0 0
  %1589 = vmatpush2.bf16.msra.mxu0 0
  %1590 = vmatprep.subr.bf16.mxu0 0
  %1591 = vmatpush2.bf16.msra.mxu0 0
  %1592 = vmatprep.subr.bf16.mxu0 0
  %1593 = vmatpush2.bf16.msra.mxu0 0
  %1594 = vmatprep.subr.bf16.mxu0 0
  %1595 = vmatpush2.bf16.msra.mxu0 0
  %1596 = vmatprep.mubr.bf16.mxu0 0
  %1597 = vmatmul.mubr.bf16.gmra.mxu0 %v1492
  %v1598 = vpop.f32.mrf.mxu0
  %v1599 = vadd.f32 %v1514, %v1598
  %v1600 = vpop.f32.mrf.mxu0
  %v1601 = vpop.f32.mrf.mxu0
  %v1602 = vadd.f32 %v1514, %v1601
  %v1603 = vpop.f32.mrf.mxu0
  %1604 = vdwg.mxu0
  %v1605 = vmax.f32 %v1599, 0.0
  %v1606 = vmax.f32 %v1602, 0.0
  %v1607 = vpack.c.bf16 %v1606, %v1605
  %v1608 = vld [vmem:[%s9] sm:$0xf]
  %v1609 = vld [vmem:[%s9 + $0x4] sm:$0xf]
  %v1610 = vld [vmem:[%s9 + $0x8] sm:$0xf]
  %v1611 = vld [vmem:[%s9 + $0xc] sm:$0xf]
  %v1612 = vld [vmem:[%s9 + $0x10] sm:$0xf]
  %v1613 = vld [vmem:[%s9 + $0x14] sm:$0xf]
  %v1614 = vld [vmem:[%s9 + $0x18] sm:$0xf]
  %v1615 = vld [vmem:[%s9 + $0x1c] sm:$0xf]
  %v1616 = vld [vmem:[%s9 + $0x20] sm:$0xf]
  %v1617 = vld [vmem:[%s9 + $0x24] sm:$0xf]
  %v1618 = vld [vmem:[%s9 + $0x28] sm:$0xf]
  %v1619 = vld [vmem:[%s9 + $0x2c] sm:$0xf]
  %v1620 = vld [vmem:[%s9 + $0x30] sm:$0xf]
  %v1621 = vld [vmem:[%s9 + $0x34] sm:$0xf]
  %v1622 = vld [vmem:[%s9 + $0x38] sm:$0xf]
  %v1623 = vld [vmem:[%s9 + $0x3c] sm:$0xf]
  %v1624 = vld [vmem:[%s10] sm:$0x1]
  %v1626 = vlaneseq
  %v1627 = vshrl.u32 %v1626, 7
  %v1628 = vsub.s32 0, %v1627
  %v1629 = vrot.slane %v1624, %v1628
  %v1647 = vunpack.c.l.b16 %v1608
  %v1648 = vunpack.c.l.b16 %v1609
  %v1649 = vunpack.c.l.b16 %v1610
  %v1650 = vunpack.c.l.b16 %v1611
  %v1651 = vunpack.c.l.b16 %v1612
  %v1652 = vunpack.c.l.b16 %v1613
  %v1653 = vunpack.c.l.b16 %v1614
  %v1654 = vunpack.c.l.b16 %v1615
  %v1655 = vunpack.c.l.b16 %v1616
  %v1656 = vunpack.c.l.b16 %v1617
  %v1657 = vunpack.c.l.b16 %v1618
  %v1658 = vunpack.c.l.b16 %v1619
  %v1659 = vunpack.c.l.b16 %v1620
  %v1660 = vunpack.c.l.b16 %v1621
  %v1661 = vunpack.c.l.b16 %v1622
  %v1662 = vunpack.c.l.b16 %v1623
  %v1663 = vpack.c.b16 %v1648, %v1647
  %v1664 = vpack.c.b16 %v1650, %v1649
  %v1665 = vpack.c.b16 %v1652, %v1651
  %v1666 = vpack.c.b16 %v1654, %v1653
  %v1667 = vpack.c.b16 %v1656, %v1655
  %v1668 = vpack.c.b16 %v1658, %v1657
  %v1669 = vpack.c.b16 %v1660, %v1659
  %v1670 = vpack.c.b16 %v1662, %v1661
  %1679 = vmatprep.subr.bf16.mxu0 0
  %1680 = vmatpush1.bf16.msra.mxu0 %v1670
  %1681 = vmatprep.subr.bf16.mxu0 0
  %1682 = vmatpush1.bf16.msra.mxu0 %v1669
  %1683 = vmatprep.subr.bf16.mxu0 0
  %1684 = vmatpush1.bf16.msra.mxu0 %v1668
  %1685 = vmatprep.subr.bf16.mxu0 0
  %1686 = vmatpush1.bf16.msra.mxu0 %v1667
  %1687 = vmatprep.subr.bf16.mxu0 0
  %1688 = vmatpush1.bf16.msra.mxu0 %v1666
  %1689 = vmatprep.subr.bf16.mxu0 0
  %1690 = vmatpush1.bf16.msra.mxu0 %v1665
  %1691 = vmatprep.subr.bf16.mxu0 0
  %1692 = vmatpush1.bf16.msra.mxu0 %v1664
  %1693 = vmatprep.subr.bf16.mxu0 0
  %1694 = vmatpush1.bf16.msra.mxu0 %v1663
  %1695 = vmatprep.subr.bf16.mxu0 0
  %1696 = vmatpush2.bf16.msra.mxu0 0
  %1697 = vmatprep.subr.bf16.mxu0 0
  %1698 = vmatpush2.bf16.msra.mxu0 0
  %1699 = vmatprep.subr.bf16.mxu0 0
  %1700 = vmatpush2.bf16.msra.mxu0 0
  %1701 = vmatprep.subr.bf16.mxu0 0
  %1702 = vmatpush2.bf16.msra.mxu0 0
  %1703 = vmatprep.subr.bf16.mxu0 0
  %1704 = vmatpush2.bf16.msra.mxu0 0
  %1705 = vmatprep.subr.bf16.mxu0 0
  %1706 = vmatpush2.bf16.msra.mxu0 0
  %1707 = vmatprep.subr.bf16.mxu0 0
  %1708 = vmatpush2.bf16.msra.mxu0 0
  %1709 = vmatprep.subr.bf16.mxu0 0
  %1710 = vmatpush2.bf16.msra.mxu0 0
  %1711 = vmatprep.mubr.bf16.mxu0 0
  %1712 = vmatmul.mubr.bf16.gmra.mxu0 %v1607
  %v1713 = vpop.f32.mrf.mxu0
  %v1714 = vadd.f32 %v1629, %v1713
  %v1715 = vpop.f32.mrf.mxu0
  %v1716 = vpop.f32.mrf.mxu0
  %v1717 = vadd.f32 %v1629, %v1716
  %v1718 = vpop.f32.mrf.mxu0
  %1719 = vdwg.mxu0
  %1720 = vst [vmem:[%s11] sm:$0xff] %v1714
  %1721 = vst [vmem:[%s11 + $0x8] sm:$0xff] %v1717
  // Predicated region
  $region46: #{qnetwork_forward.1} parent=0 // pred_check
    _
  $region47: #{qnetwork_forward.1} parent=0 // pred_check_branch
    %1723 = sbr.rel (0) target = $region49
  $region48: #{qnetwork_forward.1} parent=0 // pred_region
    _
  $region49: #{qnetwork_forward.1} parent=0 // pred_fallthru
    _
  // Predicated region
  $region50: #{qnetwork_forward.1} parent=0 // pred_check
    _
  $region51: #{qnetwork_forward.1} parent=0 // pred_check_branch
    %1725 = sbr.rel (0) target = $region53
  $region52: #{qnetwork_forward.1} parent=0 // pred_region
    _
  $region53: #{qnetwork_forward.1} parent=0 // pred_fallthru
    _

</llo_original>
